<compile_context>
chip_gen: v7x
topology: tpu7x:2x2x1
jax: 0.10.0
libtpu: 0.0.40
codegen_flags: <defaults>
</compile_context>

<pallas_src>
import math

import jax
import jax.numpy as jnp
from jax import lax
from jax.experimental import pallas as pl
from jax.experimental.pallas import tpu as pltpu


def _round_up(x, m):
    return (x + m - 1) // m * m


def gcn_layer_kernel(adj_ref, feat_ref, wt_ref, b_ref, out_ref, h_acc):
    """Grid = (row blocks, k blocks).  h_acc: (tm, Din_p) f32 scratch."""
    k = pl.program_id(1)

    @pl.when(k == 0)
    def _init():
        h_acc[...] = jnp.zeros_like(h_acc)

    # h_tile += A[i, k] @ F[k, :]   (MXU, f32 accumulation)
    h_acc[...] += jnp.dot(
        adj_ref[...],
        feat_ref[...],
        preferred_element_type=jnp.float32,
        precision=lax.Precision.HIGHEST,
    )

    @pl.when(k == pl.num_programs(1) - 1)
    def _finalize():
        # y = h @ W^T + b ; leaky_relu(0.01). Weight arrives pre-transposed
        # as (Din_p, Dout_p); bias broadcast + epilogue only once per row block.
        y = jnp.dot(
            h_acc[...],
            wt_ref[...],
            preferred_element_type=jnp.float32,
            precision=lax.Precision.HIGHEST,
        ) + b_ref[...]
        out_ref[...] = jnp.where(y > 0, y, 0.01 * y).astype(out_ref.dtype)


def gcn_layer(adjacency_mat, feature_mat, weight, bias, *, tm_max=256, tk_max=512):
    """adjacency_mat: (N, N), feature_mat: (N, Din), weight: (Dout, Din),
    bias: (Dout,).  Returns (N, Dout) float32."""
    N, Din = feature_mat.shape
    Dout = weight.shape[0]
    f32 = jnp.float32

    # Tile sizes: tk (adjacency lane dim) multiple of 128, tm multiple of 8
    # and dividing tk so both divide the padded N.
    tk = min(tk_max, _round_up(N, 128))
    tm = math.gcd(tm_max, tk)
    N_pad = _round_up(N, tk)
    Din_p = _round_up(Din, 128)
    Dout_p = _round_up(Dout, 128)

    # Zero-pad to lane/sublane-friendly shapes; zeros do not change the valid
    # region of the result (padded rows are discarded at the end).
    a_p = jnp.zeros((N_pad, N_pad), f32).at[:N, :N].set(adjacency_mat.astype(f32))
    f_p = jnp.zeros((N_pad, Din_p), f32).at[:N, :Din].set(feature_mat.astype(f32))
    wt_p = jnp.zeros((Din_p, Dout_p), f32).at[:Din, :Dout].set(weight.T.astype(f32))
    b_p = jnp.zeros((1, Dout_p), f32).at[0, :Dout].set(bias.astype(f32))

    grid = (N_pad // tm, N_pad // tk)

    out_p = pl.pallas_call(
        gcn_layer_kernel,
        out_shape=jax.ShapeDtypeStruct((N_pad, Dout_p), f32),
        grid_spec=pltpu.PrefetchScalarGridSpec(
            num_scalar_prefetch=0,
            grid=grid,
            in_specs=[
                pl.BlockSpec((tm, tk), lambda i, k: (i, k)),       # adjacency tile
                pl.BlockSpec((tk, Din_p), lambda i, k: (k, 0)),    # feature tile
                pl.BlockSpec((Din_p, Dout_p), lambda i, k: (0, 0)),  # W^T (resident)
                pl.BlockSpec((1, Dout_p), lambda i, k: (0, 0)),    # bias (resident)
            ],
            out_specs=pl.BlockSpec((tm, Dout_p), lambda i, k: (i, 0)),
            scratch_shapes=[pltpu.VMEM((tm, Din_p), jnp.float32)],
        ),
        compiler_params=pltpu.CompilerParams(
            dimension_semantics=("parallel", "arbitrary"),
        ),
    )(a_p, f_p, wt_p, b_p)

    return out_p[:N, :Dout]


def gcn_layer_ref(adjacency_mat, feature_mat, weight, bias):
    """Pure-JAX reference mirroring the PyTorch module."""
    h = jnp.dot(adjacency_mat, feature_mat, precision=lax.Precision.HIGHEST)
    y = jnp.dot(h, weight.T, precision=lax.Precision.HIGHEST) + bias
    return jnp.where(y > 0, y, 0.01 * y)


if __name__ == "__main__":
    # Small shapes consistent with the module: N nodes, in_dims -> out_dims.
    N, in_dims, out_dims = 16, 8, 32

    key = jax.random.PRNGKey(0)
    k_adj, k_feat, k_w, k_b = jax.random.split(key, 4)

    adjacency = jax.random.uniform(k_adj, (N, N), dtype=jnp.float32)
    feature = jax.random.normal(k_feat, (N, in_dims), dtype=jnp.float32)

    # Mimics nn.Linear's uniform(-1/sqrt(in_dims), 1/sqrt(in_dims)) init.
    bound = 1.0 / (in_dims ** 0.5)
    weight = jax.random.uniform(
        k_w, (out_dims, in_dims), minval=-bound, maxval=bound, dtype=jnp.float32)
    bias = jax.random.uniform(
        k_b, (out_dims,), minval=-bound, maxval=bound, dtype=jnp.float32)

    out = gcn_layer(adjacency, feature, weight, bias)
    out = jax.block_until_ready(out)

    ref = gcn_layer_ref(adjacency, feature, weight, bias)
    assert out.shape == (N, out_dims)
    assert jnp.allclose(out, ref, atol=1e-5, rtol=1e-5), (
        float(jnp.max(jnp.abs(out - ref))))

    print("KERNEL_OK")
</pallas_src>

<mosaic_0001>
module attributes {stable_mosaic.version = 11 : i64} {
  func.func @gcn_layer_kernel(%arg0: i32, %arg1: i32, %arg2: memref<128x128xf32, #tpu.memory_space<vmem>>, %arg3: memref<128x128xf32, #tpu.memory_space<vmem>>, %arg4: memref<128x128xf32, #tpu.memory_space<vmem>>, %arg5: memref<1x128xf32, #tpu.memory_space<vmem>>, %arg6: memref<128x128xf32, #tpu.memory_space<vmem>>, %arg7: memref<128x128xf32, #tpu.memory_space<vmem>>) attributes {dimension_semantics = [#tpu.dimension_semantics<parallel>, #tpu.dimension_semantics<arbitrary>], iteration_bounds = array<i64: 1, 1>, scalar_prefetch = 0 : i64, scratch_operands = 1 : i64, tpu.core_type = #tpu.core_type<tc>, window_params = [{transform_indices = @transform_0, window_bounds = array<i64: 128, 128>}, {transform_indices = @transform_1, window_bounds = array<i64: 128, 128>}, {pipeline_mode = #tpu.pipeline_mode<synchronous>, transform_indices = @transform_2, window_bounds = array<i64: 128, 128>}, {pipeline_mode = #tpu.pipeline_mode<synchronous>, transform_indices = @transform_3, window_bounds = array<i64: 1, 128>}, {transform_indices = @transform_4, window_bounds = array<i64: 128, 128>}]} {
    %c0_i32 = arith.constant 0 : i32
    %0 = arith.cmpi eq, %arg1, %c0_i32 : i32
    %1 = arith.extui %0 : i1 to i32
    %c0_i32_0 = arith.constant 0 : i32
    %2 = arith.cmpi ne, %1, %c0_i32_0 : i32
    scf.if %2 {
      %cst_10 = arith.constant 0.000000e+00 : f32
      %12 = vector.broadcast %cst_10 : f32 to vector<128x128xf32>
      %c0_11 = arith.constant 0 : index
      %c0_12 = arith.constant 0 : index
      %13 = vector.load %arg7[%c0_11, %c0_12] : memref<128x128xf32, #tpu.memory_space<vmem>>, vector<128x128xf32>
      tpu.vector_store %arg7[%c0_11, %c0_12], %12 {strides = array<i32>} : memref<128x128xf32, #tpu.memory_space<vmem>>, vector<128x128xf32>,
    } else {
    }
    %c0 = arith.constant 0 : index
    %c0_1 = arith.constant 0 : index
    %3 = vector.load %arg7[%c0, %c0_1] : memref<128x128xf32, #tpu.memory_space<vmem>>, vector<128x128xf32>
    %c0_2 = arith.constant 0 : index
    %c0_3 = arith.constant 0 : index
    %4 = vector.load %arg2[%c0_2, %c0_3] : memref<128x128xf32, #tpu.memory_space<vmem>>, vector<128x128xf32>
    %c0_4 = arith.constant 0 : index
    %c0_5 = arith.constant 0 : index
    %5 = vector.load %arg3[%c0_4, %c0_5] : memref<128x128xf32, #tpu.memory_space<vmem>>, vector<128x128xf32>
    %cst = arith.constant dense<0.000000e+00> : vector<128x128xf32>
    %6 = tpu.matmul %4, %5, %cst {dimension_numbers = #tpu.dot_dimension_numbers<[1], [0], [0], [1], [0, 0, 1, 1], [], []>, precision = #tpu.contract_precision<fp32>} : vector<128x128xf32>, vector<128x128xf32>, vector<128x128xf32> -> vector<128x128xf32>
    %7 = arith.addf %3, %6 : vector<128x128xf32>
    %c0_6 = arith.constant 0 : index
    %c0_7 = arith.constant 0 : index
    %8 = vector.load %arg7[%c0_6, %c0_7] : memref<128x128xf32, #tpu.memory_space<vmem>>, vector<128x128xf32>
    tpu.vector_store %arg7[%c0_6, %c0_7], %7 {strides = array<i32>} : memref<128x128xf32, #tpu.memory_space<vmem>>, vector<128x128xf32>,
    %c0_i32_8 = arith.constant 0 : i32
    %9 = arith.cmpi eq, %arg1, %c0_i32_8 : i32
    %10 = arith.extui %9 : i1 to i32
    %c0_i32_9 = arith.constant 0 : i32
    %11 = arith.cmpi ne, %10, %c0_i32_9 : i32
    scf.if %11 {
      %c0_10 = arith.constant 0 : index
      %c0_11 = arith.constant 0 : index
      %12 = vector.load %arg7[%c0_10, %c0_11] : memref<128x128xf32, #tpu.memory_space<vmem>>, vector<128x128xf32>
      %c0_12 = arith.constant 0 : index
      %c0_13 = arith.constant 0 : index
      %13 = vector.load %arg4[%c0_12, %c0_13] : memref<128x128xf32, #tpu.memory_space<vmem>>, vector<128x128xf32>
      %cst_14 = arith.constant dense<0.000000e+00> : vector<128x128xf32>
      %14 = tpu.matmul %12, %13, %cst_14 {dimension_numbers = #tpu.dot_dimension_numbers<[1], [0], [0], [1], [0, 0, 1, 1], [], []>, precision = #tpu.contract_precision<fp32>} : vector<128x128xf32>, vector<128x128xf32>, vector<128x128xf32> -> vector<128x128xf32>
      %c0_15 = arith.constant 0 : index
      %c0_16 = arith.constant 0 : index
      %15 = vector.load %arg5[%c0_15, %c0_16] : memref<1x128xf32, #tpu.memory_space<vmem>>, vector<1x128xf32>
      %16 = vector.broadcast %15 : vector<1x128xf32> to vector<128x128xf32>
      %17 = arith.addf %14, %16 : vector<128x128xf32>
      %cst_17 = arith.constant 0.000000e+00 : f32
      %18 = vector.broadcast %cst_17 : f32 to vector<128x128xf32>
      %19 = arith.cmpf ogt, %17, %18 : vector<128x128xf32>
      %cst_18 = arith.constant 0.00999999977 : f32
      %20 = vector.broadcast %cst_18 : f32 to vector<128x128xf32>
      %21 = arith.mulf %20, %17 : vector<128x128xf32>
      %22 = arith.select %19, %17, %21 : vector<128x128xi1>, vector<128x128xf32>
      %c0_19 = arith.constant 0 : index
      %c0_20 = arith.constant 0 : index
      %23 = vector.load %arg6[%c0_19, %c0_20] : memref<128x128xf32, #tpu.memory_space<vmem>>, vector<128x128xf32>
      tpu.vector_store %arg6[%c0_19, %c0_20], %22 {strides = array<i32>} : memref<128x128xf32, #tpu.memory_space<vmem>>, vector<128x128xf32>,
    } else {
    }
    return
  }
  func.func @transform_0(%arg0: i32, %arg1: i32) -> (i32, i32) {
    %c0_i32 = arith.constant 0 : i32
    return %arg0, %arg1 : i32, i32
  }
  func.func @transform_1(%arg0: i32, %arg1: i32) -> (i32, i32) {
    %c0_i32 = arith.constant 0 : i32
    %c0_i32_0 = arith.constant 0 : i32
    return %arg1, %c0_i32 : i32, i32
  }
  func.func @transform_2(%arg0: i32, %arg1: i32) -> (i32, i32) {
    %c0_i32 = arith.constant 0 : i32
    %c0_i32_0 = arith.constant 0 : i32
    %c0_i32_1 = arith.constant 0 : i32
    return %c0_i32, %c0_i32_0 : i32, i32
  }
  func.func @transform_3(%arg0: i32, %arg1: i32) -> (i32, i32) {
    %c0_i32 = arith.constant 0 : i32
    %c0_i32_0 = arith.constant 0 : i32
    %c0_i32_1 = arith.constant 0 : i32
    return %c0_i32, %c0_i32_0 : i32, i32
  }
  func.func @transform_4(%arg0: i32, %arg1: i32) -> (i32, i32) {
    %c0_i32 = arith.constant 0 : i32
    %c0_i32_0 = arith.constant 0 : i32
    return %arg0, %c0_i32 : i32, i32
  }
}

</mosaic_0001>

<llo_original>
// kernel: tpu_custom_call.1
$region0: #{tpu_custom_call.1}
  #allocation0 [shape = 'u32[]', space=smem, size = 0x4, offset = 0x4, fixed_abs, tag = 'smem constant byte address 0x4 - core index']
  #allocation1 [shape = 'u32[144,128]{1,0:T(1,128)}', space=vmem, size = 0x12000, scoped, tag = 'internal scratch']
  #allocation2 [shape = 'f32[128,128]{1,0:T(8,128)}', space=vmem, size = 0x10000, scoped, tag = 'scratch operand']
  %s0 = inlined_call_operand.hbm [shape: f32[128,128], index: 0, kind: input, shape index: {}]
  %s1 = inlined_call_operand.hbm [shape: f32[128,128], index: 1, kind: input, shape index: {}]
  %s2 = inlined_call_operand.hbm [shape: f32[128,128], index: 2, kind: input, shape index: {}]
  %s3 = inlined_call_operand.vmem [shape: f32[1,128], index: 3, kind: input, shape index: {}]
  %s4 = inlined_call_operand.hbm [shape: f32[128,128], index: 4, kind: output, shape index: {}]
  %s5 = sld [smem:[#allocation0]]
  $region46: #{tpu_custom_call.1} parent=0
    _
  %s7 = ssub.s32 1, %s5
  %s8 = scalar_select 0, %s7, %s5
  $region1: #{tpu_custom_call.1} parent=0
    #allocation3 [shape = 'u8[65536]{0}', space=vmem, size = 0x10000, scoped, tag = 'input window, operand 0, single buffered']
    #allocation4 [shape = 's32[1]{0}', space=sflag, size = 0x4, scoped, tag = 'scoped memory for tpu_custom_call.1']
    #allocation5 [shape = 's32[1]{0}', space=sflag, size = 0x4, scoped, tag = 'scoped memory for tpu_custom_call.1']
    #allocation6 [shape = 'u8[65536]{0}', space=vmem, size = 0x10000, scoped, tag = 'input window, operand 1, single buffered']
    #allocation7 [shape = 's32[1]{0}', space=sflag, size = 0x4, scoped, tag = 'scoped memory for tpu_custom_call.1']
    #allocation8 [shape = 'u8[65536]{0}', space=vmem, size = 0x10000, scoped, tag = 'input window, operand 2, single buffered']
    #allocation9 [shape = 'u8[65536]{0}', space=vmem, size = 0x10000, scoped, tag = 'output window, operand 0, single buffered']
    %9 = vsyncpa [#allocation4], 0
    %10 = vsyncpa [#allocation7], 0
    %11 = vsyncpa [#allocation5], 0
    // Predicated region
    $region2: #{tpu_custom_call.1} parent=1 // pred_check
      _
    $region3: #{tpu_custom_call.1} parent=1 // pred_check_branch
      %13 = sbr.rel (0) target = $region5
    $region4: #{tpu_custom_call.1} parent=1 // pred_region
      %s15 = ssub.s32 2048, 2048
      %16 = vsyncadd [#allocation4], %s15
      %s17 = sshll.u32 [#allocation3], 4
      %s18 = int_to_ptr.vmem [resolvable:$true] %s17
      %23 = dma.hbm_to_vmem [thread:$0]  %s0, 2048, %s18, [#allocation4], 128, 128, 8
    $region5: #{tpu_custom_call.1} parent=1 // pred_fallthru
      _
    // Predicated region
    $region6: #{tpu_custom_call.1} parent=1 // pred_check
      _
    $region7: #{tpu_custom_call.1} parent=1 // pred_check_branch
      %25 = sbr.rel (0) target = $region9
    $region8: #{tpu_custom_call.1} parent=1 // pred_region
      %s27 = ssub.s32 2048, 2048
      %28 = vsyncadd [#allocation7], %s27
      %s29 = sshll.u32 [#allocation6], 4
      %s30 = int_to_ptr.vmem [resolvable:$true] %s29
      %35 = dma.hbm_to_vmem [thread:$0]  %s1, 2048, %s30, [#allocation7], 128, 128, 8
    $region9: #{tpu_custom_call.1} parent=1 // pred_fallthru
      _
    // Predicated region
    $region10: #{tpu_custom_call.1} parent=1 // pred_check
      _
    $region11: #{tpu_custom_call.1} parent=1 // pred_check_branch
      %37 = sbr.rel (0) target = $region13
    $region12: #{tpu_custom_call.1} parent=1 // pred_region
      %s39 = ssub.s32 2048, 2048
      %40 = vsyncadd [#allocation7], %s39
      %s41 = sshll.u32 [#allocation8], 4
      %s42 = int_to_ptr.vmem [resolvable:$true] %s41
      %47 = dma.hbm_to_vmem [thread:$0]  %s2, 2048, %s42, [#allocation7], 128, 128, 8
    $region13: #{tpu_custom_call.1} parent=1 // pred_fallthru
      _
    // Predicated region
    $region14: #{tpu_custom_call.1} parent=1 // pred_check
      _
    $region15: #{tpu_custom_call.1} parent=1 // pred_check_branch
      %49 = sbr.rel (0) target = $region17
    $region16: #{tpu_custom_call.1} parent=1 // pred_region
      _
    $region17: #{tpu_custom_call.1} parent=1 // pred_fallthru
      _
    // Predicated region
    $region18: #{tpu_custom_call.1} parent=1 // pred_check
      _
    $region19: #{tpu_custom_call.1} parent=1 // pred_check_branch
      %51 = sbr.rel (0) target = $region21
    $region20: #{tpu_custom_call.1} parent=1 // pred_region
      %52 = dma.done [#allocation4], 2048
    $region21: #{tpu_custom_call.1} parent=1 // pred_fallthru
      _
    // Predicated region
    $region22: #{tpu_custom_call.1} parent=1 // pred_check
      _
    $region23: #{tpu_custom_call.1} parent=1 // pred_check_branch
      %54 = sbr.rel (0) target = $region25
    $region24: #{tpu_custom_call.1} parent=1 // pred_region
      %55 = dma.done [#allocation7], 2048
    $region25: #{tpu_custom_call.1} parent=1 // pred_fallthru
      _
    // Predicated region
    $region26: #{tpu_custom_call.1} parent=1 // pred_check
      _
    $region27: #{tpu_custom_call.1} parent=1 // pred_check_branch
      %57 = sbr.rel (0) target = $region29
    $region28: #{tpu_custom_call.1} parent=1 // pred_region
      %58 = dma.done [#allocation7], 2048
    $region29: #{tpu_custom_call.1} parent=1 // pred_fallthru
      _
    %p59 = scmp.eq.s32.totalorder 0, 0
    // Predicated region
    $region30: #{tpu_custom_call.1} parent=1 // pred_check
      %p60 = pneg %p59
    $region31: #{tpu_custom_call.1} parent=1 // pred_check_branch
      %62 = sbr.rel (%p60) target = $region33
    $region32: #{tpu_custom_call.1} parent=1 // pred_region
      %63 = vst [vmem:[#allocation2] sm:$0xff] 0.0
      %64 = vst [vmem:[#allocation2 + $0x8] sm:$0xff] 0.0
      %65 = vst [vmem:[#allocation2 + $0x10] sm:$0xff] 0.0
      %66 = vst [vmem:[#allocation2 + $0x18] sm:$0xff] 0.0
      %67 = vst [vmem:[#allocation2 + $0x20] sm:$0xff] 0.0
      %68 = vst [vmem:[#allocation2 + $0x28] sm:$0xff] 0.0
      %69 = vst [vmem:[#allocation2 + $0x30] sm:$0xff] 0.0
      %70 = vst [vmem:[#allocation2 + $0x38] sm:$0xff] 0.0
      %71 = vst [vmem:[#allocation2 + $0x40] sm:$0xff] 0.0
      %72 = vst [vmem:[#allocation2 + $0x48] sm:$0xff] 0.0
      %73 = vst [vmem:[#allocation2 + $0x50] sm:$0xff] 0.0
      %74 = vst [vmem:[#allocation2 + $0x58] sm:$0xff] 0.0
      %75 = vst [vmem:[#allocation2 + $0x60] sm:$0xff] 0.0
      %76 = vst [vmem:[#allocation2 + $0x68] sm:$0xff] 0.0
      %77 = vst [vmem:[#allocation2 + $0x70] sm:$0xff] 0.0
      %78 = vst [vmem:[#allocation2 + $0x78] sm:$0xff] 0.0
    $region33: #{tpu_custom_call.1} parent=1 // pred_fallthru
      _
    %v79 = vld [vmem:[#allocation2] sm:$0xff]
    %v80 = vld [vmem:[#allocation2 + $0x8] sm:$0xff]
    %v81 = vld [vmem:[#allocation2 + $0x10] sm:$0xff]
    %v82 = vld [vmem:[#allocation2 + $0x18] sm:$0xff]
    %v83 = vld [vmem:[#allocation2 + $0x20] sm:$0xff]
    %v84 = vld [vmem:[#allocation2 + $0x28] sm:$0xff]
    %v85 = vld [vmem:[#allocation2 + $0x30] sm:$0xff]
    %v86 = vld [vmem:[#allocation2 + $0x38] sm:$0xff]
    %v87 = vld [vmem:[#allocation2 + $0x40] sm:$0xff]
    %v88 = vld [vmem:[#allocation2 + $0x48] sm:$0xff]
    %v89 = vld [vmem:[#allocation2 + $0x50] sm:$0xff]
    %v90 = vld [vmem:[#allocation2 + $0x58] sm:$0xff]
    %v91 = vld [vmem:[#allocation2 + $0x60] sm:$0xff]
    %v92 = vld [vmem:[#allocation2 + $0x68] sm:$0xff]
    %v93 = vld [vmem:[#allocation2 + $0x70] sm:$0xff]
    %v94 = vld [vmem:[#allocation2 + $0x78] sm:$0xff]
    %v95 = vld [vmem:[#allocation3] sm:$0xff]
    %v96 = vld [vmem:[#allocation3 + $0x8] sm:$0xff]
    %v97 = vld [vmem:[#allocation3 + $0x10] sm:$0xff]
    %v98 = vld [vmem:[#allocation3 + $0x18] sm:$0xff]
    %v99 = vld [vmem:[#allocation3 + $0x20] sm:$0xff]
    %v100 = vld [vmem:[#allocation3 + $0x28] sm:$0xff]
    %v101 = vld [vmem:[#allocation3 + $0x30] sm:$0xff]
    %v102 = vld [vmem:[#allocation3 + $0x38] sm:$0xff]
    %v103 = vld [vmem:[#allocation3 + $0x40] sm:$0xff]
    %v104 = vld [vmem:[#allocation3 + $0x48] sm:$0xff]
    %v105 = vld [vmem:[#allocation3 + $0x50] sm:$0xff]
    %v106 = vld [vmem:[#allocation3 + $0x58] sm:$0xff]
    %v107 = vld [vmem:[#allocation3 + $0x60] sm:$0xff]
    %v108 = vld [vmem:[#allocation3 + $0x68] sm:$0xff]
    %v109 = vld [vmem:[#allocation3 + $0x70] sm:$0xff]
    %v110 = vld [vmem:[#allocation3 + $0x78] sm:$0xff]
    %v111 = vld [vmem:[#allocation6] sm:$0xff]
    %v112 = vld [vmem:[#allocation6 + $0x8] sm:$0xff]
    %v113 = vld [vmem:[#allocation6 + $0x10] sm:$0xff]
    %v114 = vld [vmem:[#allocation6 + $0x18] sm:$0xff]
    %v115 = vld [vmem:[#allocation6 + $0x20] sm:$0xff]
    %v116 = vld [vmem:[#allocation6 + $0x28] sm:$0xff]
    %v117 = vld [vmem:[#allocation6 + $0x30] sm:$0xff]
    %v118 = vld [vmem:[#allocation6 + $0x38] sm:$0xff]
    %v119 = vld [vmem:[#allocation6 + $0x40] sm:$0xff]
    %v120 = vld [vmem:[#allocation6 + $0x48] sm:$0xff]
    %v121 = vld [vmem:[#allocation6 + $0x50] sm:$0xff]
    %v122 = vld [vmem:[#allocation6 + $0x58] sm:$0xff]
    %v123 = vld [vmem:[#allocation6 + $0x60] sm:$0xff]
    %v124 = vld [vmem:[#allocation6 + $0x68] sm:$0xff]
    %v125 = vld [vmem:[#allocation6 + $0x70] sm:$0xff]
    %v126 = vld [vmem:[#allocation6 + $0x78] sm:$0xff]
    %127 = vmatprep.subr.mxu0 0.0
    %v128 = vand.u32 %v111, 4294901760
    %129 = vmatpush1.msra.mxu0 %v128
    %130 = vmatprep.subr.mxu0 0.0
    %v131 = vand.u32 %v112, 4294901760
    %132 = vmatpush1.msra.mxu0 %v131
    %133 = vmatprep.subr.mxu0 0.0
    %v134 = vand.u32 %v113, 4294901760
    %135 = vmatpush1.msra.mxu0 %v134
    %136 = vmatprep.subr.mxu0 0.0
    %v137 = vand.u32 %v114, 4294901760
    %138 = vmatpush1.msra.mxu0 %v137
    %139 = vmatprep.subr.mxu0 0.0
    %v140 = vand.u32 %v115, 4294901760
    %141 = vmatpush1.msra.mxu0 %v140
    %142 = vmatprep.subr.mxu0 0.0
    %v143 = vand.u32 %v116, 4294901760
    %144 = vmatpush1.msra.mxu0 %v143
    %145 = vmatprep.subr.mxu0 0.0
    %v146 = vand.u32 %v117, 4294901760
    %147 = vmatpush1.msra.mxu0 %v146
    %148 = vmatprep.subr.mxu0 0.0
    %v149 = vand.u32 %v118, 4294901760
    %150 = vmatpush1.msra.mxu0 %v149
    %151 = vmatprep.subr.mxu0 0.0
    %v152 = vand.u32 %v119, 4294901760
    %153 = vmatpush1.msra.mxu0 %v152
    %154 = vmatprep.subr.mxu0 0.0
    %v155 = vand.u32 %v120, 4294901760
    %156 = vmatpush1.msra.mxu0 %v155
    %157 = vmatprep.subr.mxu0 0.0
    %v158 = vand.u32 %v121, 4294901760
    %159 = vmatpush1.msra.mxu0 %v158
    %160 = vmatprep.subr.mxu0 0.0
    %v161 = vand.u32 %v122, 4294901760
    %162 = vmatpush1.msra.mxu0 %v161
    %163 = vmatprep.subr.mxu0 0.0
    %v164 = vand.u32 %v123, 4294901760
    %165 = vmatpush1.msra.mxu0 %v164
    %166 = vmatprep.subr.mxu0 0.0
    %v167 = vand.u32 %v124, 4294901760
    %168 = vmatpush1.msra.mxu0 %v167
    %169 = vmatprep.subr.mxu0 0.0
    %v170 = vand.u32 %v125, 4294901760
    %171 = vmatpush1.msra.mxu0 %v170
    %172 = vmatprep.subr.mxu0 0.0
    %v173 = vand.u32 %v126, 4294901760
    %174 = vmatpush1.msra.mxu0 %v173
    %175 = vmatprep.subr.mxu0 0.0
    %176 = vmatpush1.msra.mxu0 0.0
    %177 = vmatprep.subr.mxu0 0.0
    %178 = vmatpush1.msra.mxu0 0.0
    %179 = vmatprep.subr.mxu0 0.0
    %180 = vmatpush1.msra.mxu0 0.0
    %181 = vmatprep.subr.mxu0 0.0
    %182 = vmatpush1.msra.mxu0 0.0
    %183 = vmatprep.subr.mxu0 0.0
    %184 = vmatpush1.msra.mxu0 0.0
    %185 = vmatprep.subr.mxu0 0.0
    %186 = vmatpush1.msra.mxu0 0.0
    %187 = vmatprep.subr.mxu0 0.0
    %188 = vmatpush1.msra.mxu0 0.0
    %189 = vmatprep.subr.mxu0 0.0
    %190 = vmatpush1.msra.mxu0 0.0
    %191 = vmatprep.subr.mxu0 0.0
    %192 = vmatpush1.msra.mxu0 0.0
    %193 = vmatprep.subr.mxu0 0.0
    %194 = vmatpush1.msra.mxu0 0.0
    %195 = vmatprep.subr.mxu0 0.0
    %196 = vmatpush1.msra.mxu0 0.0
    %197 = vmatprep.subr.mxu0 0.0
    %198 = vmatpush1.msra.mxu0 0.0
    %199 = vmatprep.subr.mxu0 0.0
    %200 = vmatpush1.msra.mxu0 0.0
    %201 = vmatprep.subr.mxu0 0.0
    %202 = vmatpush1.msra.mxu0 0.0
    %203 = vmatprep.subr.mxu0 0.0
    %204 = vmatpush1.msra.mxu0 0.0
    %205 = vmatprep.subr.mxu0 0.0
    %206 = vmatpush1.msra.mxu0 0.0
    %207 = vmatprep.mubr.f32.mxu0 0.0
    %v208 = vand.u32 %v95, 4294901760
    %v209 = vsub.f32 %v95, %v208
    %v210 = vand.u32 %v209, 4294901760
    %v211 = vsub.f32 %v209, %v210
    %v212 = vand.u32 %v211, 4294901760
    %213 = vmatmul.mubr.f32.gmra.mrb[0].mxu0 %v212
    %v214 = vpop.f32.mrb[0].mxu0
    %v215 = vadd.f32 0.0, %v214
    %v216 = vpop.f32.mrb[0].mxu0
    %217 = vmatprep.mubr.f32.mxu0 0.0
    %v218 = vand.u32 %v96, 4294901760
    %v219 = vsub.f32 %v96, %v218
    %v220 = vand.u32 %v219, 4294901760
    %v221 = vsub.f32 %v219, %v220
    %v222 = vand.u32 %v221, 4294901760
    %223 = vmatmul.mubr.f32.gmra.mrb[0].mxu0 %v222
    %v224 = vpop.f32.mrb[0].mxu0
    %v225 = vadd.f32 0.0, %v224
    %v226 = vpop.f32.mrb[0].mxu0
    %227 = vmatprep.mubr.f32.mxu0 0.0
    %v228 = vand.u32 %v97, 4294901760
    %v229 = vsub.f32 %v97, %v228
    %v230 = vand.u32 %v229, 4294901760
    %v231 = vsub.f32 %v229, %v230
    %v232 = vand.u32 %v231, 4294901760
    %233 = vmatmul.mubr.f32.gmra.mrb[0].mxu0 %v232
    %v234 = vpop.f32.mrb[0].mxu0
    %v235 = vadd.f32 0.0, %v234
    %v236 = vpop.f32.mrb[0].mxu0
    %237 = vmatprep.mubr.f32.mxu0 0.0
    %v238 = vand.u32 %v98, 4294901760
    %v239 = vsub.f32 %v98, %v238
    %v240 = vand.u32 %v239, 4294901760
    %v241 = vsub.f32 %v239, %v240
    %v242 = vand.u32 %v241, 4294901760
    %243 = vmatmul.mubr.f32.gmra.mrb[0].mxu0 %v242
    %v244 = vpop.f32.mrb[0].mxu0
    %v245 = vadd.f32 0.0, %v244
    %v246 = vpop.f32.mrb[0].mxu0
    %247 = vmatprep.mubr.f32.mxu0 0.0
    %v248 = vand.u32 %v99, 4294901760
    %v249 = vsub.f32 %v99, %v248
    %v250 = vand.u32 %v249, 4294901760
    %v251 = vsub.f32 %v249, %v250
    %v252 = vand.u32 %v251, 4294901760
    %253 = vmatmul.mubr.f32.gmra.mrb[0].mxu0 %v252
    %v254 = vpop.f32.mrb[0].mxu0
    %v255 = vadd.f32 0.0, %v254
    %v256 = vpop.f32.mrb[0].mxu0
    %257 = vmatprep.mubr.f32.mxu0 0.0
    %v258 = vand.u32 %v100, 4294901760
    %v259 = vsub.f32 %v100, %v258
    %v260 = vand.u32 %v259, 4294901760
    %v261 = vsub.f32 %v259, %v260
    %v262 = vand.u32 %v261, 4294901760
    %263 = vmatmul.mubr.f32.gmra.mrb[0].mxu0 %v262
    %v264 = vpop.f32.mrb[0].mxu0
    %v265 = vadd.f32 0.0, %v264
    %v266 = vpop.f32.mrb[0].mxu0
    %267 = vmatprep.mubr.f32.mxu0 0.0
    %v268 = vand.u32 %v101, 4294901760
    %v269 = vsub.f32 %v101, %v268
    %v270 = vand.u32 %v269, 4294901760
    %v271 = vsub.f32 %v269, %v270
    %v272 = vand.u32 %v271, 4294901760
    %273 = vmatmul.mubr.f32.gmra.mrb[0].mxu0 %v272
    %v274 = vpop.f32.mrb[0].mxu0
    %v275 = vadd.f32 0.0, %v274
    %v276 = vpop.f32.mrb[0].mxu0
    %277 = vmatprep.mubr.f32.mxu0 0.0
    %v278 = vand.u32 %v102, 4294901760
    %v279 = vsub.f32 %v102, %v278
    %v280 = vand.u32 %v279, 4294901760
    %v281 = vsub.f32 %v279, %v280
    %v282 = vand.u32 %v281, 4294901760
    %283 = vmatmul.mubr.f32.gmra.mrb[0].mxu0 %v282
    %v284 = vpop.f32.mrb[0].mxu0
    %v285 = vadd.f32 0.0, %v284
    %v286 = vpop.f32.mrb[0].mxu0
    %287 = vmatprep.mubr.f32.mxu0 0.0
    %v288 = vand.u32 %v103, 4294901760
    %v289 = vsub.f32 %v103, %v288
    %v290 = vand.u32 %v289, 4294901760
    %v291 = vsub.f32 %v289, %v290
    %v292 = vand.u32 %v291, 4294901760
    %293 = vmatmul.mubr.f32.gmra.mrb[0].mxu0 %v292
    %v294 = vpop.f32.mrb[0].mxu0
    %v295 = vadd.f32 0.0, %v294
    %v296 = vpop.f32.mrb[0].mxu0
    %297 = vmatprep.mubr.f32.mxu0 0.0
    %v298 = vand.u32 %v104, 4294901760
    %v299 = vsub.f32 %v104, %v298
    %v300 = vand.u32 %v299, 4294901760
    %v301 = vsub.f32 %v299, %v300
    %v302 = vand.u32 %v301, 4294901760
    %303 = vmatmul.mubr.f32.gmra.mrb[0].mxu0 %v302
    %v304 = vpop.f32.mrb[0].mxu0
    %v305 = vadd.f32 0.0, %v304
    %v306 = vpop.f32.mrb[0].mxu0
    %307 = vmatprep.mubr.f32.mxu0 0.0
    %v308 = vand.u32 %v105, 4294901760
    %v309 = vsub.f32 %v105, %v308
    %v310 = vand.u32 %v309, 4294901760
    %v311 = vsub.f32 %v309, %v310
    %v312 = vand.u32 %v311, 4294901760
    %313 = vmatmul.mubr.f32.gmra.mrb[0].mxu0 %v312
    %v314 = vpop.f32.mrb[0].mxu0
    %v315 = vadd.f32 0.0, %v314
    %v316 = vpop.f32.mrb[0].mxu0
    %317 = vmatprep.mubr.f32.mxu0 0.0
    %v318 = vand.u32 %v106, 4294901760
    %v319 = vsub.f32 %v106, %v318
    %v320 = vand.u32 %v319, 4294901760
    %v321 = vsub.f32 %v319, %v320
    %v322 = vand.u32 %v321, 4294901760
    %323 = vmatmul.mubr.f32.gmra.mrb[0].mxu0 %v322
    %v324 = vpop.f32.mrb[0].mxu0
    %v325 = vadd.f32 0.0, %v324
    %v326 = vpop.f32.mrb[0].mxu0
    %327 = vmatprep.mubr.f32.mxu0 0.0
    %v328 = vand.u32 %v107, 4294901760
    %v329 = vsub.f32 %v107, %v328
    %v330 = vand.u32 %v329, 4294901760
    %v331 = vsub.f32 %v329, %v330
    %v332 = vand.u32 %v331, 4294901760
    %333 = vmatmul.mubr.f32.gmra.mrb[0].mxu0 %v332
    %v334 = vpop.f32.mrb[0].mxu0
    %v335 = vadd.f32 0.0, %v334
    %v336 = vpop.f32.mrb[0].mxu0
    %337 = vmatprep.mubr.f32.mxu0 0.0
    %v338 = vand.u32 %v108, 4294901760
    %v339 = vsub.f32 %v108, %v338
    %v340 = vand.u32 %v339, 4294901760
    %v341 = vsub.f32 %v339, %v340
    %v342 = vand.u32 %v341, 4294901760
    %343 = vmatmul.mubr.f32.gmra.mrb[0].mxu0 %v342
    %v344 = vpop.f32.mrb[0].mxu0
    %v345 = vadd.f32 0.0, %v344
    %v346 = vpop.f32.mrb[0].mxu0
    %347 = vmatprep.mubr.f32.mxu0 0.0
    %v348 = vand.u32 %v109, 4294901760
    %v349 = vsub.f32 %v109, %v348
    %v350 = vand.u32 %v349, 4294901760
    %v351 = vsub.f32 %v349, %v350
    %v352 = vand.u32 %v351, 4294901760
    %353 = vmatmul.mubr.f32.gmra.mrb[0].mxu0 %v352
    %v354 = vpop.f32.mrb[0].mxu0
    %v355 = vadd.f32 0.0, %v354
    %v356 = vpop.f32.mrb[0].mxu0
    %357 = vmatprep.mubr.f32.mxu0 0.0
    %v358 = vand.u32 %v110, 4294901760
    %v359 = vsub.f32 %v110, %v358
    %v360 = vand.u32 %v359, 4294901760
    %v361 = vsub.f32 %v359, %v360
    %v362 = vand.u32 %v361, 4294901760
    %363 = vmatmul.mubr.f32.gmra.mrb[0].mxu0 %v362
    %v364 = vpop.f32.mrb[0].mxu0
    %v365 = vadd.f32 0.0, %v364
    %v366 = vpop.f32.mrb[0].mxu0
    %367 = vdwg.mxu0
    %368 = vmatprep.subr.mxu0 0.0
    %v369 = vand.u32 %v111, 4294901760
    %v370 = vsub.f32 %v111, %v369
    %v371 = vand.u32 %v370, 4294901760
    %v372 = vsub.f32 %v370, %v371
    %v373 = vand.u32 %v372, 4294901760
    %374 = vmatpush1.msra.mxu0 %v373
    %375 = vmatprep.subr.mxu0 0.0
    %v376 = vand.u32 %v112, 4294901760
    %v377 = vsub.f32 %v112, %v376
    %v378 = vand.u32 %v377, 4294901760
    %v379 = vsub.f32 %v377, %v378
    %v380 = vand.u32 %v379, 4294901760
    %381 = vmatpush1.msra.mxu0 %v380
    %382 = vmatprep.subr.mxu0 0.0
    %v383 = vand.u32 %v113, 4294901760
    %v384 = vsub.f32 %v113, %v383
    %v385 = vand.u32 %v384, 4294901760
    %v386 = vsub.f32 %v384, %v385
    %v387 = vand.u32 %v386, 4294901760
    %388 = vmatpush1.msra.mxu0 %v387
    %389 = vmatprep.subr.mxu0 0.0
    %v390 = vand.u32 %v114, 4294901760
    %v391 = vsub.f32 %v114, %v390
    %v392 = vand.u32 %v391, 4294901760
    %v393 = vsub.f32 %v391, %v392
    %v394 = vand.u32 %v393, 4294901760
    %395 = vmatpush1.msra.mxu0 %v394
    %396 = vmatprep.subr.mxu0 0.0
    %v397 = vand.u32 %v115, 4294901760
    %v398 = vsub.f32 %v115, %v397
    %v399 = vand.u32 %v398, 4294901760
    %v400 = vsub.f32 %v398, %v399
    %v401 = vand.u32 %v400, 4294901760
    %402 = vmatpush1.msra.mxu0 %v401
    %403 = vmatprep.subr.mxu0 0.0
    %v404 = vand.u32 %v116, 4294901760
    %v405 = vsub.f32 %v116, %v404
    %v406 = vand.u32 %v405, 4294901760
    %v407 = vsub.f32 %v405, %v406
    %v408 = vand.u32 %v407, 4294901760
    %409 = vmatpush1.msra.mxu0 %v408
    %410 = vmatprep.subr.mxu0 0.0
    %v411 = vand.u32 %v117, 4294901760
    %v412 = vsub.f32 %v117, %v411
    %v413 = vand.u32 %v412, 4294901760
    %v414 = vsub.f32 %v412, %v413
    %v415 = vand.u32 %v414, 4294901760
    %416 = vmatpush1.msra.mxu0 %v415
    %417 = vmatprep.subr.mxu0 0.0
    %v418 = vand.u32 %v118, 4294901760
    %v419 = vsub.f32 %v118, %v418
    %v420 = vand.u32 %v419, 4294901760
    %v421 = vsub.f32 %v419, %v420
    %v422 = vand.u32 %v421, 4294901760
    %423 = vmatpush1.msra.mxu0 %v422
    %424 = vmatprep.subr.mxu0 0.0
    %v425 = vand.u32 %v119, 4294901760
    %v426 = vsub.f32 %v119, %v425
    %v427 = vand.u32 %v426, 4294901760
    %v428 = vsub.f32 %v426, %v427
    %v429 = vand.u32 %v428, 4294901760
    %430 = vmatpush1.msra.mxu0 %v429
    %431 = vmatprep.subr.mxu0 0.0
    %v432 = vand.u32 %v120, 4294901760
    %v433 = vsub.f32 %v120, %v432
    %v434 = vand.u32 %v433, 4294901760
    %v435 = vsub.f32 %v433, %v434
    %v436 = vand.u32 %v435, 4294901760
    %437 = vmatpush1.msra.mxu0 %v436
    %438 = vmatprep.subr.mxu0 0.0
    %v439 = vand.u32 %v121, 4294901760
    %v440 = vsub.f32 %v121, %v439
    %v441 = vand.u32 %v440, 4294901760
    %v442 = vsub.f32 %v440, %v441
    %v443 = vand.u32 %v442, 4294901760
    %444 = vmatpush1.msra.mxu0 %v443
    %445 = vmatprep.subr.mxu0 0.0
    %v446 = vand.u32 %v122, 4294901760
    %v447 = vsub.f32 %v122, %v446
    %v448 = vand.u32 %v447, 4294901760
    %v449 = vsub.f32 %v447, %v448
    %v450 = vand.u32 %v449, 4294901760
    %451 = vmatpush1.msra.mxu0 %v450
    %452 = vmatprep.subr.mxu0 0.0
    %v453 = vand.u32 %v123, 4294901760
    %v454 = vsub.f32 %v123, %v453
    %v455 = vand.u32 %v454, 4294901760
    %v456 = vsub.f32 %v454, %v455
    %v457 = vand.u32 %v456, 4294901760
    %458 = vmatpush1.msra.mxu0 %v457
    %459 = vmatprep.subr.mxu0 0.0
    %v460 = vand.u32 %v124, 4294901760
    %v461 = vsub.f32 %v124, %v460
    %v462 = vand.u32 %v461, 4294901760
    %v463 = vsub.f32 %v461, %v462
    %v464 = vand.u32 %v463, 4294901760
    %465 = vmatpush1.msra.mxu0 %v464
    %466 = vmatprep.subr.mxu0 0.0
    %v467 = vand.u32 %v125, 4294901760
    %v468 = vsub.f32 %v125, %v467
    %v469 = vand.u32 %v468, 4294901760
    %v470 = vsub.f32 %v468, %v469
    %v471 = vand.u32 %v470, 4294901760
    %472 = vmatpush1.msra.mxu0 %v471
    %473 = vmatprep.subr.mxu0 0.0
    %v474 = vand.u32 %v126, 4294901760
    %v475 = vsub.f32 %v126, %v474
    %v476 = vand.u32 %v475, 4294901760
    %v477 = vsub.f32 %v475, %v476
    %v478 = vand.u32 %v477, 4294901760
    %479 = vmatpush1.msra.mxu0 %v478
    %480 = vmatprep.subr.mxu0 0.0
    %481 = vmatpush1.msra.mxu0 0.0
    %482 = vmatprep.subr.mxu0 0.0
    %483 = vmatpush1.msra.mxu0 0.0
    %484 = vmatprep.subr.mxu0 0.0
    %485 = vmatpush1.msra.mxu0 0.0
    %486 = vmatprep.subr.mxu0 0.0
    %487 = vmatpush1.msra.mxu0 0.0
    %488 = vmatprep.subr.mxu0 0.0
    %489 = vmatpush1.msra.mxu0 0.0
    %490 = vmatprep.subr.mxu0 0.0
    %491 = vmatpush1.msra.mxu0 0.0
    %492 = vmatprep.subr.mxu0 0.0
    %493 = vmatpush1.msra.mxu0 0.0
    %494 = vmatprep.subr.mxu0 0.0
    %495 = vmatpush1.msra.mxu0 0.0
    %496 = vmatprep.subr.mxu0 0.0
    %497 = vmatpush1.msra.mxu0 0.0
    %498 = vmatprep.subr.mxu0 0.0
    %499 = vmatpush1.msra.mxu0 0.0
    %500 = vmatprep.subr.mxu0 0.0
    %501 = vmatpush1.msra.mxu0 0.0
    %502 = vmatprep.subr.mxu0 0.0
    %503 = vmatpush1.msra.mxu0 0.0
    %504 = vmatprep.subr.mxu0 0.0
    %505 = vmatpush1.msra.mxu0 0.0
    %506 = vmatprep.subr.mxu0 0.0
    %507 = vmatpush1.msra.mxu0 0.0
    %508 = vmatprep.subr.mxu0 0.0
    %509 = vmatpush1.msra.mxu0 0.0
    %510 = vmatprep.subr.mxu0 0.0
    %511 = vmatpush1.msra.mxu0 0.0
    %512 = vmatprep.mubr.f32.mxu0 0.0
    %v513 = vand.u32 %v95, 4294901760
    %514 = vmatmul.mubr.f32.gmra.mrb[0].mxu0 %v513
    %v515 = vpop.f32.mrb[0].mxu0
    %v516 = vadd.f32 %v215, %v515
    %v517 = vpop.f32.mrb[0].mxu0
    %518 = vmatprep.mubr.f32.mxu0 0.0
    %v519 = vand.u32 %v96, 4294901760
    %520 = vmatmul.mubr.f32.gmra.mrb[0].mxu0 %v519
    %v521 = vpop.f32.mrb[0].mxu0
    %v522 = vadd.f32 %v225, %v521
    %v523 = vpop.f32.mrb[0].mxu0
    %524 = vmatprep.mubr.f32.mxu0 0.0
    %v525 = vand.u32 %v97, 4294901760
    %526 = vmatmul.mubr.f32.gmra.mrb[0].mxu0 %v525
    %v527 = vpop.f32.mrb[0].mxu0
    %v528 = vadd.f32 %v235, %v527
    %v529 = vpop.f32.mrb[0].mxu0
    %530 = vmatprep.mubr.f32.mxu0 0.0
    %v531 = vand.u32 %v98, 4294901760
    %532 = vmatmul.mubr.f32.gmra.mrb[0].mxu0 %v531
    %v533 = vpop.f32.mrb[0].mxu0
    %v534 = vadd.f32 %v245, %v533
    %v535 = vpop.f32.mrb[0].mxu0
    %536 = vmatprep.mubr.f32.mxu0 0.0
    %v537 = vand.u32 %v99, 4294901760
    %538 = vmatmul.mubr.f32.gmra.mrb[0].mxu0 %v537
    %v539 = vpop.f32.mrb[0].mxu0
    %v540 = vadd.f32 %v255, %v539
    %v541 = vpop.f32.mrb[0].mxu0
    %542 = vmatprep.mubr.f32.mxu0 0.0
    %v543 = vand.u32 %v100, 4294901760
    %544 = vmatmul.mubr.f32.gmra.mrb[0].mxu0 %v543
    %v545 = vpop.f32.mrb[0].mxu0
    %v546 = vadd.f32 %v265, %v545
    %v547 = vpop.f32.mrb[0].mxu0
    %548 = vmatprep.mubr.f32.mxu0 0.0
    %v549 = vand.u32 %v101, 4294901760
    %550 = vmatmul.mubr.f32.gmra.mrb[0].mxu0 %v549
    %v551 = vpop.f32.mrb[0].mxu0
    %v552 = vadd.f32 %v275, %v551
    %v553 = vpop.f32.mrb[0].mxu0
    %554 = vmatprep.mubr.f32.mxu0 0.0
    %v555 = vand.u32 %v102, 4294901760
    %556 = vmatmul.mubr.f32.gmra.mrb[0].mxu0 %v555
    %v557 = vpop.f32.mrb[0].mxu0
    %v558 = vadd.f32 %v285, %v557
    %v559 = vpop.f32.mrb[0].mxu0
    %560 = vmatprep.mubr.f32.mxu0 0.0
    %v561 = vand.u32 %v103, 4294901760
    %562 = vmatmul.mubr.f32.gmra.mrb[0].mxu0 %v561
    %v563 = vpop.f32.mrb[0].mxu0
    %v564 = vadd.f32 %v295, %v563
    %v565 = vpop.f32.mrb[0].mxu0
    %566 = vmatprep.mubr.f32.mxu0 0.0
    %v567 = vand.u32 %v104, 4294901760
    %568 = vmatmul.mubr.f32.gmra.mrb[0].mxu0 %v567
    %v569 = vpop.f32.mrb[0].mxu0
    %v570 = vadd.f32 %v305, %v569
    %v571 = vpop.f32.mrb[0].mxu0
    %572 = vmatprep.mubr.f32.mxu0 0.0
    %v573 = vand.u32 %v105, 4294901760
    %574 = vmatmul.mubr.f32.gmra.mrb[0].mxu0 %v573
    %v575 = vpop.f32.mrb[0].mxu0
    %v576 = vadd.f32 %v315, %v575
    %v577 = vpop.f32.mrb[0].mxu0
    %578 = vmatprep.mubr.f32.mxu0 0.0
    %v579 = vand.u32 %v106, 4294901760
    %580 = vmatmul.mubr.f32.gmra.mrb[0].mxu0 %v579
    %v581 = vpop.f32.mrb[0].mxu0
    %v582 = vadd.f32 %v325, %v581
    %v583 = vpop.f32.mrb[0].mxu0
    %584 = vmatprep.mubr.f32.mxu0 0.0
    %v585 = vand.u32 %v107, 4294901760
    %586 = vmatmul.mubr.f32.gmra.mrb[0].mxu0 %v585
    %v587 = vpop.f32.mrb[0].mxu0
    %v588 = vadd.f32 %v335, %v587
    %v589 = vpop.f32.mrb[0].mxu0
    %590 = vmatprep.mubr.f32.mxu0 0.0
    %v591 = vand.u32 %v108, 4294901760
    %592 = vmatmul.mubr.f32.gmra.mrb[0].mxu0 %v591
    %v593 = vpop.f32.mrb[0].mxu0
    %v594 = vadd.f32 %v345, %v593
    %v595 = vpop.f32.mrb[0].mxu0
    %596 = vmatprep.mubr.f32.mxu0 0.0
    %v597 = vand.u32 %v109, 4294901760
    %598 = vmatmul.mubr.f32.gmra.mrb[0].mxu0 %v597
    %v599 = vpop.f32.mrb[0].mxu0
    %v600 = vadd.f32 %v355, %v599
    %v601 = vpop.f32.mrb[0].mxu0
    %602 = vmatprep.mubr.f32.mxu0 0.0
    %v603 = vand.u32 %v110, 4294901760
    %604 = vmatmul.mubr.f32.gmra.mrb[0].mxu0 %v603
    %v605 = vpop.f32.mrb[0].mxu0
    %v606 = vadd.f32 %v365, %v605
    %v607 = vpop.f32.mrb[0].mxu0
    %608 = vdwg.mxu0
    %609 = vmatprep.subr.mxu0 0.0
    %v610 = vand.u32 %v111, 4294901760
    %v611 = vsub.f32 %v111, %v610
    %612 = vmatpush1.msra.mxu0 %v611
    %613 = vmatprep.subr.mxu0 0.0
    %v614 = vand.u32 %v112, 4294901760
    %v615 = vsub.f32 %v112, %v614
    %616 = vmatpush1.msra.mxu0 %v615
    %617 = vmatprep.subr.mxu0 0.0
    %v618 = vand.u32 %v113, 4294901760
    %v619 = vsub.f32 %v113, %v618
    %620 = vmatpush1.msra.mxu0 %v619
    %621 = vmatprep.subr.mxu0 0.0
    %v622 = vand.u32 %v114, 4294901760
    %v623 = vsub.f32 %v114, %v622
    %624 = vmatpush1.msra.mxu0 %v623
    %625 = vmatprep.subr.mxu0 0.0
    %v626 = vand.u32 %v115, 4294901760
    %v627 = vsub.f32 %v115, %v626
    %628 = vmatpush1.msra.mxu0 %v627
    %629 = vmatprep.subr.mxu0 0.0
    %v630 = vand.u32 %v116, 4294901760
    %v631 = vsub.f32 %v116, %v630
    %632 = vmatpush1.msra.mxu0 %v631
    %633 = vmatprep.subr.mxu0 0.0
    %v634 = vand.u32 %v117, 4294901760
    %v635 = vsub.f32 %v117, %v634
    %636 = vmatpush1.msra.mxu0 %v635
    %637 = vmatprep.subr.mxu0 0.0
    %v638 = vand.u32 %v118, 4294901760
    %v639 = vsub.f32 %v118, %v638
    %640 = vmatpush1.msra.mxu0 %v639
    %641 = vmatprep.subr.mxu0 0.0
    %v642 = vand.u32 %v119, 4294901760
    %v643 = vsub.f32 %v119, %v642
    %644 = vmatpush1.msra.mxu0 %v643
    %645 = vmatprep.subr.mxu0 0.0
    %v646 = vand.u32 %v120, 4294901760
    %v647 = vsub.f32 %v120, %v646
    %648 = vmatpush1.msra.mxu0 %v647
    %649 = vmatprep.subr.mxu0 0.0
    %v650 = vand.u32 %v121, 4294901760
    %v651 = vsub.f32 %v121, %v650
    %652 = vmatpush1.msra.mxu0 %v651
    %653 = vmatprep.subr.mxu0 0.0
    %v654 = vand.u32 %v122, 4294901760
    %v655 = vsub.f32 %v122, %v654
    %656 = vmatpush1.msra.mxu0 %v655
    %657 = vmatprep.subr.mxu0 0.0
    %v658 = vand.u32 %v123, 4294901760
    %v659 = vsub.f32 %v123, %v658
    %660 = vmatpush1.msra.mxu0 %v659
    %661 = vmatprep.subr.mxu0 0.0
    %v662 = vand.u32 %v124, 4294901760
    %v663 = vsub.f32 %v124, %v662
    %664 = vmatpush1.msra.mxu0 %v663
    %665 = vmatprep.subr.mxu0 0.0
    %v666 = vand.u32 %v125, 4294901760
    %v667 = vsub.f32 %v125, %v666
    %668 = vmatpush1.msra.mxu0 %v667
    %669 = vmatprep.subr.mxu0 0.0
    %v670 = vand.u32 %v126, 4294901760
    %v671 = vsub.f32 %v126, %v670
    %672 = vmatpush1.msra.mxu0 %v671
    %673 = vmatprep.subr.mxu0 0.0
    %674 = vmatpush1.msra.mxu0 0.0
    %675 = vmatprep.subr.mxu0 0.0
    %676 = vmatpush1.msra.mxu0 0.0
    %677 = vmatprep.subr.mxu0 0.0
    %678 = vmatpush1.msra.mxu0 0.0
    %679 = vmatprep.subr.mxu0 0.0
    %680 = vmatpush1.msra.mxu0 0.0
    %681 = vmatprep.subr.mxu0 0.0
    %682 = vmatpush1.msra.mxu0 0.0
    %683 = vmatprep.subr.mxu0 0.0
    %684 = vmatpush1.msra.mxu0 0.0
    %685 = vmatprep.subr.mxu0 0.0
    %686 = vmatpush1.msra.mxu0 0.0
    %687 = vmatprep.subr.mxu0 0.0
    %688 = vmatpush1.msra.mxu0 0.0
    %689 = vmatprep.subr.mxu0 0.0
    %690 = vmatpush1.msra.mxu0 0.0
    %691 = vmatprep.subr.mxu0 0.0
    %692 = vmatpush1.msra.mxu0 0.0
    %693 = vmatprep.subr.mxu0 0.0
    %694 = vmatpush1.msra.mxu0 0.0
    %695 = vmatprep.subr.mxu0 0.0
    %696 = vmatpush1.msra.mxu0 0.0
    %697 = vmatprep.subr.mxu0 0.0
    %698 = vmatpush1.msra.mxu0 0.0
    %699 = vmatprep.subr.mxu0 0.0
    %700 = vmatpush1.msra.mxu0 0.0
    %701 = vmatprep.subr.mxu0 0.0
    %702 = vmatpush1.msra.mxu0 0.0
    %703 = vmatprep.subr.mxu0 0.0
    %704 = vmatpush1.msra.mxu0 0.0
    %705 = vmatprep.mubr.f32.mxu0 0.0
    %v706 = vand.u32 %v95, 4294901760
    %v707 = vsub.f32 %v95, %v706
    %708 = vmatmul.mubr.f32.gmra.mrb[0].mxu0 %v707
    %v709 = vpop.f32.mrb[0].mxu0
    %v710 = vadd.f32 %v516, %v709
    %v711 = vpop.f32.mrb[0].mxu0
    %712 = vmatprep.mubr.f32.mxu0 0.0
    %v713 = vand.u32 %v96, 4294901760
    %v714 = vsub.f32 %v96, %v713
    %715 = vmatmul.mubr.f32.gmra.mrb[0].mxu0 %v714
    %v716 = vpop.f32.mrb[0].mxu0
    %v717 = vadd.f32 %v522, %v716
    %v718 = vpop.f32.mrb[0].mxu0
    %719 = vmatprep.mubr.f32.mxu0 0.0
    %v720 = vand.u32 %v97, 4294901760
    %v721 = vsub.f32 %v97, %v720
    %722 = vmatmul.mubr.f32.gmra.mrb[0].mxu0 %v721
    %v723 = vpop.f32.mrb[0].mxu0
    %v724 = vadd.f32 %v528, %v723
    %v725 = vpop.f32.mrb[0].mxu0
    %726 = vmatprep.mubr.f32.mxu0 0.0
    %v727 = vand.u32 %v98, 4294901760
    %v728 = vsub.f32 %v98, %v727
    %729 = vmatmul.mubr.f32.gmra.mrb[0].mxu0 %v728
    %v730 = vpop.f32.mrb[0].mxu0
    %v731 = vadd.f32 %v534, %v730
    %v732 = vpop.f32.mrb[0].mxu0
    %733 = vmatprep.mubr.f32.mxu0 0.0
    %v734 = vand.u32 %v99, 4294901760
    %v735 = vsub.f32 %v99, %v734
    %736 = vmatmul.mubr.f32.gmra.mrb[0].mxu0 %v735
    %v737 = vpop.f32.mrb[0].mxu0
    %v738 = vadd.f32 %v540, %v737
    %v739 = vpop.f32.mrb[0].mxu0
    %740 = vmatprep.mubr.f32.mxu0 0.0
    %v741 = vand.u32 %v100, 4294901760
    %v742 = vsub.f32 %v100, %v741
    %743 = vmatmul.mubr.f32.gmra.mrb[0].mxu0 %v742
    %v744 = vpop.f32.mrb[0].mxu0
    %v745 = vadd.f32 %v546, %v744
    %v746 = vpop.f32.mrb[0].mxu0
    %747 = vmatprep.mubr.f32.mxu0 0.0
    %v748 = vand.u32 %v101, 4294901760
    %v749 = vsub.f32 %v101, %v748
    %750 = vmatmul.mubr.f32.gmra.mrb[0].mxu0 %v749
    %v751 = vpop.f32.mrb[0].mxu0
    %v752 = vadd.f32 %v552, %v751
    %v753 = vpop.f32.mrb[0].mxu0
    %754 = vmatprep.mubr.f32.mxu0 0.0
    %v755 = vand.u32 %v102, 4294901760
    %v756 = vsub.f32 %v102, %v755
    %757 = vmatmul.mubr.f32.gmra.mrb[0].mxu0 %v756
    %v758 = vpop.f32.mrb[0].mxu0
    %v759 = vadd.f32 %v558, %v758
    %v760 = vpop.f32.mrb[0].mxu0
    %761 = vmatprep.mubr.f32.mxu0 0.0
    %v762 = vand.u32 %v103, 4294901760
    %v763 = vsub.f32 %v103, %v762
    %764 = vmatmul.mubr.f32.gmra.mrb[0].mxu0 %v763
    %v765 = vpop.f32.mrb[0].mxu0
    %v766 = vadd.f32 %v564, %v765
    %v767 = vpop.f32.mrb[0].mxu0
    %768 = vmatprep.mubr.f32.mxu0 0.0
    %v769 = vand.u32 %v104, 4294901760
    %v770 = vsub.f32 %v104, %v769
    %771 = vmatmul.mubr.f32.gmra.mrb[0].mxu0 %v770
    %v772 = vpop.f32.mrb[0].mxu0
    %v773 = vadd.f32 %v570, %v772
    %v774 = vpop.f32.mrb[0].mxu0
    %775 = vmatprep.mubr.f32.mxu0 0.0
    %v776 = vand.u32 %v105, 4294901760
    %v777 = vsub.f32 %v105, %v776
    %778 = vmatmul.mubr.f32.gmra.mrb[0].mxu0 %v777
    %v779 = vpop.f32.mrb[0].mxu0
    %v780 = vadd.f32 %v576, %v779
    %v781 = vpop.f32.mrb[0].mxu0
    %782 = vmatprep.mubr.f32.mxu0 0.0
    %v783 = vand.u32 %v106, 4294901760
    %v784 = vsub.f32 %v106, %v783
    %785 = vmatmul.mubr.f32.gmra.mrb[0].mxu0 %v784
    %v786 = vpop.f32.mrb[0].mxu0
    %v787 = vadd.f32 %v582, %v786
    %v788 = vpop.f32.mrb[0].mxu0
    %789 = vmatprep.mubr.f32.mxu0 0.0
    %v790 = vand.u32 %v107, 4294901760
    %v791 = vsub.f32 %v107, %v790
    %792 = vmatmul.mubr.f32.gmra.mrb[0].mxu0 %v791
    %v793 = vpop.f32.mrb[0].mxu0
    %v794 = vadd.f32 %v588, %v793
    %v795 = vpop.f32.mrb[0].mxu0
    %796 = vmatprep.mubr.f32.mxu0 0.0
    %v797 = vand.u32 %v108, 4294901760
    %v798 = vsub.f32 %v108, %v797
    %799 = vmatmul.mubr.f32.gmra.mrb[0].mxu0 %v798
    %v800 = vpop.f32.mrb[0].mxu0
    %v801 = vadd.f32 %v594, %v800
    %v802 = vpop.f32.mrb[0].mxu0
    %803 = vmatprep.mubr.f32.mxu0 0.0
    %v804 = vand.u32 %v109, 4294901760
    %v805 = vsub.f32 %v109, %v804
    %806 = vmatmul.mubr.f32.gmra.mrb[0].mxu0 %v805
    %v807 = vpop.f32.mrb[0].mxu0
    %v808 = vadd.f32 %v600, %v807
    %v809 = vpop.f32.mrb[0].mxu0
    %810 = vmatprep.mubr.f32.mxu0 0.0
    %v811 = vand.u32 %v110, 4294901760
    %v812 = vsub.f32 %v110, %v811
    %813 = vmatmul.mubr.f32.gmra.mrb[0].mxu0 %v812
    %v814 = vpop.f32.mrb[0].mxu0
    %v815 = vadd.f32 %v606, %v814
    %v816 = vpop.f32.mrb[0].mxu0
    %817 = vdwg.mxu0
    %818 = vmatprep.subr.mxu0 0.0
    %v819 = vand.u32 %v111, 4294901760
    %820 = vmatpush1.msra.mxu0 %v819
    %821 = vmatprep.subr.mxu0 0.0
    %v822 = vand.u32 %v112, 4294901760
    %823 = vmatpush1.msra.mxu0 %v822
    %824 = vmatprep.subr.mxu0 0.0
    %v825 = vand.u32 %v113, 4294901760
    %826 = vmatpush1.msra.mxu0 %v825
    %827 = vmatprep.subr.mxu0 0.0
    %v828 = vand.u32 %v114, 4294901760
    %829 = vmatpush1.msra.mxu0 %v828
    %830 = vmatprep.subr.mxu0 0.0
    %v831 = vand.u32 %v115, 4294901760
    %832 = vmatpush1.msra.mxu0 %v831
    %833 = vmatprep.subr.mxu0 0.0
    %v834 = vand.u32 %v116, 4294901760
    %835 = vmatpush1.msra.mxu0 %v834
    %836 = vmatprep.subr.mxu0 0.0
    %v837 = vand.u32 %v117, 4294901760
    %838 = vmatpush1.msra.mxu0 %v837
    %839 = vmatprep.subr.mxu0 0.0
    %v840 = vand.u32 %v118, 4294901760
    %841 = vmatpush1.msra.mxu0 %v840
    %842 = vmatprep.subr.mxu0 0.0
    %v843 = vand.u32 %v119, 4294901760
    %844 = vmatpush1.msra.mxu0 %v843
    %845 = vmatprep.subr.mxu0 0.0
    %v846 = vand.u32 %v120, 4294901760
    %847 = vmatpush1.msra.mxu0 %v846
    %848 = vmatprep.subr.mxu0 0.0
    %v849 = vand.u32 %v121, 4294901760
    %850 = vmatpush1.msra.mxu0 %v849
    %851 = vmatprep.subr.mxu0 0.0
    %v852 = vand.u32 %v122, 4294901760
    %853 = vmatpush1.msra.mxu0 %v852
    %854 = vmatprep.subr.mxu0 0.0
    %v855 = vand.u32 %v123, 4294901760
    %856 = vmatpush1.msra.mxu0 %v855
    %857 = vmatprep.subr.mxu0 0.0
    %v858 = vand.u32 %v124, 4294901760
    %859 = vmatpush1.msra.mxu0 %v858
    %860 = vmatprep.subr.mxu0 0.0
    %v861 = vand.u32 %v125, 4294901760
    %862 = vmatpush1.msra.mxu0 %v861
    %863 = vmatprep.subr.mxu0 0.0
    %v864 = vand.u32 %v126, 4294901760
    %865 = vmatpush1.msra.mxu0 %v864
    %866 = vmatprep.subr.mxu0 0.0
    %867 = vmatpush1.msra.mxu0 0.0
    %868 = vmatprep.subr.mxu0 0.0
    %869 = vmatpush1.msra.mxu0 0.0
    %870 = vmatprep.subr.mxu0 0.0
    %871 = vmatpush1.msra.mxu0 0.0
    %872 = vmatprep.subr.mxu0 0.0
    %873 = vmatpush1.msra.mxu0 0.0
    %874 = vmatprep.subr.mxu0 0.0
    %875 = vmatpush1.msra.mxu0 0.0
    %876 = vmatprep.subr.mxu0 0.0
    %877 = vmatpush1.msra.mxu0 0.0
    %878 = vmatprep.subr.mxu0 0.0
    %879 = vmatpush1.msra.mxu0 0.0
    %880 = vmatprep.subr.mxu0 0.0
    %881 = vmatpush1.msra.mxu0 0.0
    %882 = vmatprep.subr.mxu0 0.0
    %883 = vmatpush1.msra.mxu0 0.0
    %884 = vmatprep.subr.mxu0 0.0
    %885 = vmatpush1.msra.mxu0 0.0
    %886 = vmatprep.subr.mxu0 0.0
    %887 = vmatpush1.msra.mxu0 0.0
    %888 = vmatprep.subr.mxu0 0.0
    %889 = vmatpush1.msra.mxu0 0.0
    %890 = vmatprep.subr.mxu0 0.0
    %891 = vmatpush1.msra.mxu0 0.0
    %892 = vmatprep.subr.mxu0 0.0
    %893 = vmatpush1.msra.mxu0 0.0
    %894 = vmatprep.subr.mxu0 0.0
    %895 = vmatpush1.msra.mxu0 0.0
    %896 = vmatprep.subr.mxu0 0.0
    %897 = vmatpush1.msra.mxu0 0.0
    %898 = vmatprep.mubr.f32.mxu0 0.0
    %v899 = vand.u32 %v95, 4294901760
    %v900 = vsub.f32 %v95, %v899
    %v901 = vand.u32 %v900, 4294901760
    %902 = vmatmul.mubr.f32.gmra.mrb[0].mxu0 %v901
    %v903 = vpop.f32.mrb[0].mxu0
    %v904 = vadd.f32 %v710, %v903
    %v905 = vpop.f32.mrb[0].mxu0
    %906 = vmatprep.mubr.f32.mxu0 0.0
    %v907 = vand.u32 %v96, 4294901760
    %v908 = vsub.f32 %v96, %v907
    %v909 = vand.u32 %v908, 4294901760
    %910 = vmatmul.mubr.f32.gmra.mrb[0].mxu0 %v909
    %v911 = vpop.f32.mrb[0].mxu0
    %v912 = vadd.f32 %v717, %v911
    %v913 = vpop.f32.mrb[0].mxu0
    %914 = vmatprep.mubr.f32.mxu0 0.0
    %v915 = vand.u32 %v97, 4294901760
    %v916 = vsub.f32 %v97, %v915
    %v917 = vand.u32 %v916, 4294901760
    %918 = vmatmul.mubr.f32.gmra.mrb[0].mxu0 %v917
    %v919 = vpop.f32.mrb[0].mxu0
    %v920 = vadd.f32 %v724, %v919
    %v921 = vpop.f32.mrb[0].mxu0
    %922 = vmatprep.mubr.f32.mxu0 0.0
    %v923 = vand.u32 %v98, 4294901760
    %v924 = vsub.f32 %v98, %v923
    %v925 = vand.u32 %v924, 4294901760
    %926 = vmatmul.mubr.f32.gmra.mrb[0].mxu0 %v925
    %v927 = vpop.f32.mrb[0].mxu0
    %v928 = vadd.f32 %v731, %v927
    %v929 = vpop.f32.mrb[0].mxu0
    %930 = vmatprep.mubr.f32.mxu0 0.0
    %v931 = vand.u32 %v99, 4294901760
    %v932 = vsub.f32 %v99, %v931
    %v933 = vand.u32 %v932, 4294901760
    %934 = vmatmul.mubr.f32.gmra.mrb[0].mxu0 %v933
    %v935 = vpop.f32.mrb[0].mxu0
    %v936 = vadd.f32 %v738, %v935
    %v937 = vpop.f32.mrb[0].mxu0
    %938 = vmatprep.mubr.f32.mxu0 0.0
    %v939 = vand.u32 %v100, 4294901760
    %v940 = vsub.f32 %v100, %v939
    %v941 = vand.u32 %v940, 4294901760
    %942 = vmatmul.mubr.f32.gmra.mrb[0].mxu0 %v941
    %v943 = vpop.f32.mrb[0].mxu0
    %v944 = vadd.f32 %v745, %v943
    %v945 = vpop.f32.mrb[0].mxu0
    %946 = vmatprep.mubr.f32.mxu0 0.0
    %v947 = vand.u32 %v101, 4294901760
    %v948 = vsub.f32 %v101, %v947
    %v949 = vand.u32 %v948, 4294901760
    %950 = vmatmul.mubr.f32.gmra.mrb[0].mxu0 %v949
    %v951 = vpop.f32.mrb[0].mxu0
    %v952 = vadd.f32 %v752, %v951
    %v953 = vpop.f32.mrb[0].mxu0
    %954 = vmatprep.mubr.f32.mxu0 0.0
    %v955 = vand.u32 %v102, 4294901760
    %v956 = vsub.f32 %v102, %v955
    %v957 = vand.u32 %v956, 4294901760
    %958 = vmatmul.mubr.f32.gmra.mrb[0].mxu0 %v957
    %v959 = vpop.f32.mrb[0].mxu0
    %v960 = vadd.f32 %v759, %v959
    %v961 = vpop.f32.mrb[0].mxu0
    %962 = vmatprep.mubr.f32.mxu0 0.0
    %v963 = vand.u32 %v103, 4294901760
    %v964 = vsub.f32 %v103, %v963
    %v965 = vand.u32 %v964, 4294901760
    %966 = vmatmul.mubr.f32.gmra.mrb[0].mxu0 %v965
    %v967 = vpop.f32.mrb[0].mxu0
    %v968 = vadd.f32 %v766, %v967
    %v969 = vpop.f32.mrb[0].mxu0
    %970 = vmatprep.mubr.f32.mxu0 0.0
    %v971 = vand.u32 %v104, 4294901760
    %v972 = vsub.f32 %v104, %v971
    %v973 = vand.u32 %v972, 4294901760
    %974 = vmatmul.mubr.f32.gmra.mrb[0].mxu0 %v973
    %v975 = vpop.f32.mrb[0].mxu0
    %v976 = vadd.f32 %v773, %v975
    %v977 = vpop.f32.mrb[0].mxu0
    %978 = vmatprep.mubr.f32.mxu0 0.0
    %v979 = vand.u32 %v105, 4294901760
    %v980 = vsub.f32 %v105, %v979
    %v981 = vand.u32 %v980, 4294901760
    %982 = vmatmul.mubr.f32.gmra.mrb[0].mxu0 %v981
    %v983 = vpop.f32.mrb[0].mxu0
    %v984 = vadd.f32 %v780, %v983
    %v985 = vpop.f32.mrb[0].mxu0
    %986 = vmatprep.mubr.f32.mxu0 0.0
    %v987 = vand.u32 %v106, 4294901760
    %v988 = vsub.f32 %v106, %v987
    %v989 = vand.u32 %v988, 4294901760
    %990 = vmatmul.mubr.f32.gmra.mrb[0].mxu0 %v989
    %v991 = vpop.f32.mrb[0].mxu0
    %v992 = vadd.f32 %v787, %v991
    %v993 = vpop.f32.mrb[0].mxu0
    %994 = vmatprep.mubr.f32.mxu0 0.0
    %v995 = vand.u32 %v107, 4294901760
    %v996 = vsub.f32 %v107, %v995
    %v997 = vand.u32 %v996, 4294901760
    %998 = vmatmul.mubr.f32.gmra.mrb[0].mxu0 %v997
    %v999 = vpop.f32.mrb[0].mxu0
    %v1000 = vadd.f32 %v794, %v999
    %v1001 = vpop.f32.mrb[0].mxu0
    %1002 = vmatprep.mubr.f32.mxu0 0.0
    %v1003 = vand.u32 %v108, 4294901760
    %v1004 = vsub.f32 %v108, %v1003
    %v1005 = vand.u32 %v1004, 4294901760
    %1006 = vmatmul.mubr.f32.gmra.mrb[0].mxu0 %v1005
    %v1007 = vpop.f32.mrb[0].mxu0
    %v1008 = vadd.f32 %v801, %v1007
    %v1009 = vpop.f32.mrb[0].mxu0
    %1010 = vmatprep.mubr.f32.mxu0 0.0
    %v1011 = vand.u32 %v109, 4294901760
    %v1012 = vsub.f32 %v109, %v1011
    %v1013 = vand.u32 %v1012, 4294901760
    %1014 = vmatmul.mubr.f32.gmra.mrb[0].mxu0 %v1013
    %v1015 = vpop.f32.mrb[0].mxu0
    %v1016 = vadd.f32 %v808, %v1015
    %v1017 = vpop.f32.mrb[0].mxu0
    %1018 = vmatprep.mubr.f32.mxu0 0.0
    %v1019 = vand.u32 %v110, 4294901760
    %v1020 = vsub.f32 %v110, %v1019
    %v1021 = vand.u32 %v1020, 4294901760
    %1022 = vmatmul.mubr.f32.gmra.mrb[0].mxu0 %v1021
    %v1023 = vpop.f32.mrb[0].mxu0
    %v1024 = vadd.f32 %v815, %v1023
    %v1025 = vpop.f32.mrb[0].mxu0
    %1026 = vdwg.mxu0
    %1027 = vmatprep.subr.mxu0 0.0
    %v1028 = vand.u32 %v111, 4294901760
    %v1029 = vsub.f32 %v111, %v1028
    %v1030 = vand.u32 %v1029, 4294901760
    %1031 = vmatpush1.msra.mxu0 %v1030
    %1032 = vmatprep.subr.mxu0 0.0
    %v1033 = vand.u32 %v112, 4294901760
    %v1034 = vsub.f32 %v112, %v1033
    %v1035 = vand.u32 %v1034, 4294901760
    %1036 = vmatpush1.msra.mxu0 %v1035
    %1037 = vmatprep.subr.mxu0 0.0
    %v1038 = vand.u32 %v113, 4294901760
    %v1039 = vsub.f32 %v113, %v1038
    %v1040 = vand.u32 %v1039, 4294901760
    %1041 = vmatpush1.msra.mxu0 %v1040
    %1042 = vmatprep.subr.mxu0 0.0
    %v1043 = vand.u32 %v114, 4294901760
    %v1044 = vsub.f32 %v114, %v1043
    %v1045 = vand.u32 %v1044, 4294901760
    %1046 = vmatpush1.msra.mxu0 %v1045
    %1047 = vmatprep.subr.mxu0 0.0
    %v1048 = vand.u32 %v115, 4294901760
    %v1049 = vsub.f32 %v115, %v1048
    %v1050 = vand.u32 %v1049, 4294901760
    %1051 = vmatpush1.msra.mxu0 %v1050
    %1052 = vmatprep.subr.mxu0 0.0
    %v1053 = vand.u32 %v116, 4294901760
    %v1054 = vsub.f32 %v116, %v1053
    %v1055 = vand.u32 %v1054, 4294901760
    %1056 = vmatpush1.msra.mxu0 %v1055
    %1057 = vmatprep.subr.mxu0 0.0
    %v1058 = vand.u32 %v117, 4294901760
    %v1059 = vsub.f32 %v117, %v1058
    %v1060 = vand.u32 %v1059, 4294901760
    %1061 = vmatpush1.msra.mxu0 %v1060
    %1062 = vmatprep.subr.mxu0 0.0
    %v1063 = vand.u32 %v118, 4294901760
    %v1064 = vsub.f32 %v118, %v1063
    %v1065 = vand.u32 %v1064, 4294901760
    %1066 = vmatpush1.msra.mxu0 %v1065
    %1067 = vmatprep.subr.mxu0 0.0
    %v1068 = vand.u32 %v119, 4294901760
    %v1069 = vsub.f32 %v119, %v1068
    %v1070 = vand.u32 %v1069, 4294901760
    %1071 = vmatpush1.msra.mxu0 %v1070
    %1072 = vmatprep.subr.mxu0 0.0
    %v1073 = vand.u32 %v120, 4294901760
    %v1074 = vsub.f32 %v120, %v1073
    %v1075 = vand.u32 %v1074, 4294901760
    %1076 = vmatpush1.msra.mxu0 %v1075
    %1077 = vmatprep.subr.mxu0 0.0
    %v1078 = vand.u32 %v121, 4294901760
    %v1079 = vsub.f32 %v121, %v1078
    %v1080 = vand.u32 %v1079, 4294901760
    %1081 = vmatpush1.msra.mxu0 %v1080
    %1082 = vmatprep.subr.mxu0 0.0
    %v1083 = vand.u32 %v122, 4294901760
    %v1084 = vsub.f32 %v122, %v1083
    %v1085 = vand.u32 %v1084, 4294901760
    %1086 = vmatpush1.msra.mxu0 %v1085
    %1087 = vmatprep.subr.mxu0 0.0
    %v1088 = vand.u32 %v123, 4294901760
    %v1089 = vsub.f32 %v123, %v1088
    %v1090 = vand.u32 %v1089, 4294901760
    %1091 = vmatpush1.msra.mxu0 %v1090
    %1092 = vmatprep.subr.mxu0 0.0
    %v1093 = vand.u32 %v124, 4294901760
    %v1094 = vsub.f32 %v124, %v1093
    %v1095 = vand.u32 %v1094, 4294901760
    %1096 = vmatpush1.msra.mxu0 %v1095
    %1097 = vmatprep.subr.mxu0 0.0
    %v1098 = vand.u32 %v125, 4294901760
    %v1099 = vsub.f32 %v125, %v1098
    %v1100 = vand.u32 %v1099, 4294901760
    %1101 = vmatpush1.msra.mxu0 %v1100
    %1102 = vmatprep.subr.mxu0 0.0
    %v1103 = vand.u32 %v126, 4294901760
    %v1104 = vsub.f32 %v126, %v1103
    %v1105 = vand.u32 %v1104, 4294901760
    %1106 = vmatpush1.msra.mxu0 %v1105
    %1107 = vmatprep.subr.mxu0 0.0
    %1108 = vmatpush1.msra.mxu0 0.0
    %1109 = vmatprep.subr.mxu0 0.0
    %1110 = vmatpush1.msra.mxu0 0.0
    %1111 = vmatprep.subr.mxu0 0.0
    %1112 = vmatpush1.msra.mxu0 0.0
    %1113 = vmatprep.subr.mxu0 0.0
    %1114 = vmatpush1.msra.mxu0 0.0
    %1115 = vmatprep.subr.mxu0 0.0
    %1116 = vmatpush1.msra.mxu0 0.0
    %1117 = vmatprep.subr.mxu0 0.0
    %1118 = vmatpush1.msra.mxu0 0.0
    %1119 = vmatprep.subr.mxu0 0.0
    %1120 = vmatpush1.msra.mxu0 0.0
    %1121 = vmatprep.subr.mxu0 0.0
    %1122 = vmatpush1.msra.mxu0 0.0
    %1123 = vmatprep.subr.mxu0 0.0
    %1124 = vmatpush1.msra.mxu0 0.0
    %1125 = vmatprep.subr.mxu0 0.0
    %1126 = vmatpush1.msra.mxu0 0.0
    %1127 = vmatprep.subr.mxu0 0.0
    %1128 = vmatpush1.msra.mxu0 0.0
    %1129 = vmatprep.subr.mxu0 0.0
    %1130 = vmatpush1.msra.mxu0 0.0
    %1131 = vmatprep.subr.mxu0 0.0
    %1132 = vmatpush1.msra.mxu0 0.0
    %1133 = vmatprep.subr.mxu0 0.0
    %1134 = vmatpush1.msra.mxu0 0.0
    %1135 = vmatprep.subr.mxu0 0.0
    %1136 = vmatpush1.msra.mxu0 0.0
    %1137 = vmatprep.subr.mxu0 0.0
    %1138 = vmatpush1.msra.mxu0 0.0
    %1139 = vmatprep.mubr.f32.mxu0 0.0
    %v1140 = vand.u32 %v95, 4294901760
    %1141 = vmatmul.mubr.f32.gmra.mrb[0].mxu0 %v1140
    %v1142 = vpop.f32.mrb[0].mxu0
    %v1143 = vadd.f32 %v904, %v1142
    %v1144 = vpop.f32.mrb[0].mxu0
    %1145 = vmatprep.mubr.f32.mxu0 0.0
    %v1146 = vand.u32 %v96, 4294901760
    %1147 = vmatmul.mubr.f32.gmra.mrb[0].mxu0 %v1146
    %v1148 = vpop.f32.mrb[0].mxu0
    %v1149 = vadd.f32 %v912, %v1148
    %v1150 = vpop.f32.mrb[0].mxu0
    %1151 = vmatprep.mubr.f32.mxu0 0.0
    %v1152 = vand.u32 %v97, 4294901760
    %1153 = vmatmul.mubr.f32.gmra.mrb[0].mxu0 %v1152
    %v1154 = vpop.f32.mrb[0].mxu0
    %v1155 = vadd.f32 %v920, %v1154
    %v1156 = vpop.f32.mrb[0].mxu0
    %1157 = vmatprep.mubr.f32.mxu0 0.0
    %v1158 = vand.u32 %v98, 4294901760
    %1159 = vmatmul.mubr.f32.gmra.mrb[0].mxu0 %v1158
    %v1160 = vpop.f32.mrb[0].mxu0
    %v1161 = vadd.f32 %v928, %v1160
    %v1162 = vpop.f32.mrb[0].mxu0
    %1163 = vmatprep.mubr.f32.mxu0 0.0
    %v1164 = vand.u32 %v99, 4294901760
    %1165 = vmatmul.mubr.f32.gmra.mrb[0].mxu0 %v1164
    %v1166 = vpop.f32.mrb[0].mxu0
    %v1167 = vadd.f32 %v936, %v1166
    %v1168 = vpop.f32.mrb[0].mxu0
    %1169 = vmatprep.mubr.f32.mxu0 0.0
    %v1170 = vand.u32 %v100, 4294901760
    %1171 = vmatmul.mubr.f32.gmra.mrb[0].mxu0 %v1170
    %v1172 = vpop.f32.mrb[0].mxu0
    %v1173 = vadd.f32 %v944, %v1172
    %v1174 = vpop.f32.mrb[0].mxu0
    %1175 = vmatprep.mubr.f32.mxu0 0.0
    %v1176 = vand.u32 %v101, 4294901760
    %1177 = vmatmul.mubr.f32.gmra.mrb[0].mxu0 %v1176
    %v1178 = vpop.f32.mrb[0].mxu0
    %v1179 = vadd.f32 %v952, %v1178
    %v1180 = vpop.f32.mrb[0].mxu0
    %1181 = vmatprep.mubr.f32.mxu0 0.0
    %v1182 = vand.u32 %v102, 4294901760
    %1183 = vmatmul.mubr.f32.gmra.mrb[0].mxu0 %v1182
    %v1184 = vpop.f32.mrb[0].mxu0
    %v1185 = vadd.f32 %v960, %v1184
    %v1186 = vpop.f32.mrb[0].mxu0
    %1187 = vmatprep.mubr.f32.mxu0 0.0
    %v1188 = vand.u32 %v103, 4294901760
    %1189 = vmatmul.mubr.f32.gmra.mrb[0].mxu0 %v1188
    %v1190 = vpop.f32.mrb[0].mxu0
    %v1191 = vadd.f32 %v968, %v1190
    %v1192 = vpop.f32.mrb[0].mxu0
    %1193 = vmatprep.mubr.f32.mxu0 0.0
    %v1194 = vand.u32 %v104, 4294901760
    %1195 = vmatmul.mubr.f32.gmra.mrb[0].mxu0 %v1194
    %v1196 = vpop.f32.mrb[0].mxu0
    %v1197 = vadd.f32 %v976, %v1196
    %v1198 = vpop.f32.mrb[0].mxu0
    %1199 = vmatprep.mubr.f32.mxu0 0.0
    %v1200 = vand.u32 %v105, 4294901760
    %1201 = vmatmul.mubr.f32.gmra.mrb[0].mxu0 %v1200
    %v1202 = vpop.f32.mrb[0].mxu0
    %v1203 = vadd.f32 %v984, %v1202
    %v1204 = vpop.f32.mrb[0].mxu0
    %1205 = vmatprep.mubr.f32.mxu0 0.0
    %v1206 = vand.u32 %v106, 4294901760
    %1207 = vmatmul.mubr.f32.gmra.mrb[0].mxu0 %v1206
    %v1208 = vpop.f32.mrb[0].mxu0
    %v1209 = vadd.f32 %v992, %v1208
    %v1210 = vpop.f32.mrb[0].mxu0
    %1211 = vmatprep.mubr.f32.mxu0 0.0
    %v1212 = vand.u32 %v107, 4294901760
    %1213 = vmatmul.mubr.f32.gmra.mrb[0].mxu0 %v1212
    %v1214 = vpop.f32.mrb[0].mxu0
    %v1215 = vadd.f32 %v1000, %v1214
    %v1216 = vpop.f32.mrb[0].mxu0
    %1217 = vmatprep.mubr.f32.mxu0 0.0
    %v1218 = vand.u32 %v108, 4294901760
    %1219 = vmatmul.mubr.f32.gmra.mrb[0].mxu0 %v1218
    %v1220 = vpop.f32.mrb[0].mxu0
    %v1221 = vadd.f32 %v1008, %v1220
    %v1222 = vpop.f32.mrb[0].mxu0
    %1223 = vmatprep.mubr.f32.mxu0 0.0
    %v1224 = vand.u32 %v109, 4294901760
    %1225 = vmatmul.mubr.f32.gmra.mrb[0].mxu0 %v1224
    %v1226 = vpop.f32.mrb[0].mxu0
    %v1227 = vadd.f32 %v1016, %v1226
    %v1228 = vpop.f32.mrb[0].mxu0
    %1229 = vmatprep.mubr.f32.mxu0 0.0
    %v1230 = vand.u32 %v110, 4294901760
    %1231 = vmatmul.mubr.f32.gmra.mrb[0].mxu0 %v1230
    %v1232 = vpop.f32.mrb[0].mxu0
    %v1233 = vadd.f32 %v1024, %v1232
    %v1234 = vpop.f32.mrb[0].mxu0
    %1235 = vdwg.mxu0
    %1236 = vmatprep.subr.mxu0 0.0
    %v1237 = vand.u32 %v111, 4294901760
    %1238 = vmatpush1.msra.mxu0 %v1237
    %1239 = vmatprep.subr.mxu0 0.0
    %v1240 = vand.u32 %v112, 4294901760
    %1241 = vmatpush1.msra.mxu0 %v1240
    %1242 = vmatprep.subr.mxu0 0.0
    %v1243 = vand.u32 %v113, 4294901760
    %1244 = vmatpush1.msra.mxu0 %v1243
    %1245 = vmatprep.subr.mxu0 0.0
    %v1246 = vand.u32 %v114, 4294901760
    %1247 = vmatpush1.msra.mxu0 %v1246
    %1248 = vmatprep.subr.mxu0 0.0
    %v1249 = vand.u32 %v115, 4294901760
    %1250 = vmatpush1.msra.mxu0 %v1249
    %1251 = vmatprep.subr.mxu0 0.0
    %v1252 = vand.u32 %v116, 4294901760
    %1253 = vmatpush1.msra.mxu0 %v1252
    %1254 = vmatprep.subr.mxu0 0.0
    %v1255 = vand.u32 %v117, 4294901760
    %1256 = vmatpush1.msra.mxu0 %v1255
    %1257 = vmatprep.subr.mxu0 0.0
    %v1258 = vand.u32 %v118, 4294901760
    %1259 = vmatpush1.msra.mxu0 %v1258
    %1260 = vmatprep.subr.mxu0 0.0
    %v1261 = vand.u32 %v119, 4294901760
    %1262 = vmatpush1.msra.mxu0 %v1261
    %1263 = vmatprep.subr.mxu0 0.0
    %v1264 = vand.u32 %v120, 4294901760
    %1265 = vmatpush1.msra.mxu0 %v1264
    %1266 = vmatprep.subr.mxu0 0.0
    %v1267 = vand.u32 %v121, 4294901760
    %1268 = vmatpush1.msra.mxu0 %v1267
    %1269 = vmatprep.subr.mxu0 0.0
    %v1270 = vand.u32 %v122, 4294901760
    %1271 = vmatpush1.msra.mxu0 %v1270
    %1272 = vmatprep.subr.mxu0 0.0
    %v1273 = vand.u32 %v123, 4294901760
    %1274 = vmatpush1.msra.mxu0 %v1273
    %1275 = vmatprep.subr.mxu0 0.0
    %v1276 = vand.u32 %v124, 4294901760
    %1277 = vmatpush1.msra.mxu0 %v1276
    %1278 = vmatprep.subr.mxu0 0.0
    %v1279 = vand.u32 %v125, 4294901760
    %1280 = vmatpush1.msra.mxu0 %v1279
    %1281 = vmatprep.subr.mxu0 0.0
    %v1282 = vand.u32 %v126, 4294901760
    %1283 = vmatpush1.msra.mxu0 %v1282
    %1284 = vmatprep.subr.mxu0 0.0
    %1285 = vmatpush1.msra.mxu0 0.0
    %1286 = vmatprep.subr.mxu0 0.0
    %1287 = vmatpush1.msra.mxu0 0.0
    %1288 = vmatprep.subr.mxu0 0.0
    %1289 = vmatpush1.msra.mxu0 0.0
    %1290 = vmatprep.subr.mxu0 0.0
    %1291 = vmatpush1.msra.mxu0 0.0
    %1292 = vmatprep.subr.mxu0 0.0
    %1293 = vmatpush1.msra.mxu0 0.0
    %1294 = vmatprep.subr.mxu0 0.0
    %1295 = vmatpush1.msra.mxu0 0.0
    %1296 = vmatprep.subr.mxu0 0.0
    %1297 = vmatpush1.msra.mxu0 0.0
    %1298 = vmatprep.subr.mxu0 0.0
    %1299 = vmatpush1.msra.mxu0 0.0
    %1300 = vmatprep.subr.mxu0 0.0
    %1301 = vmatpush1.msra.mxu0 0.0
    %1302 = vmatprep.subr.mxu0 0.0
    %1303 = vmatpush1.msra.mxu0 0.0
    %1304 = vmatprep.subr.mxu0 0.0
    %1305 = vmatpush1.msra.mxu0 0.0
    %1306 = vmatprep.subr.mxu0 0.0
    %1307 = vmatpush1.msra.mxu0 0.0
    %1308 = vmatprep.subr.mxu0 0.0
    %1309 = vmatpush1.msra.mxu0 0.0
    %1310 = vmatprep.subr.mxu0 0.0
    %1311 = vmatpush1.msra.mxu0 0.0
    %1312 = vmatprep.subr.mxu0 0.0
    %1313 = vmatpush1.msra.mxu0 0.0
    %1314 = vmatprep.subr.mxu0 0.0
    %1315 = vmatpush1.msra.mxu0 0.0
    %1316 = vmatprep.mubr.f32.mxu0 0.0
    %v1317 = vand.u32 %v95, 4294901760
    %1318 = vmatmul.mubr.f32.gmra.mrb[0].mxu0 %v1317
    %v1319 = vpop.f32.mrb[0].mxu0
    %v1320 = vadd.f32 %v1143, %v1319
    %v1321 = vpop.f32.mrb[0].mxu0
    %1322 = vmatprep.mubr.f32.mxu0 0.0
    %v1323 = vand.u32 %v96, 4294901760
    %1324 = vmatmul.mubr.f32.gmra.mrb[0].mxu0 %v1323
    %v1325 = vpop.f32.mrb[0].mxu0
    %v1326 = vadd.f32 %v1149, %v1325
    %v1327 = vpop.f32.mrb[0].mxu0
    %1328 = vmatprep.mubr.f32.mxu0 0.0
    %v1329 = vand.u32 %v97, 4294901760
    %1330 = vmatmul.mubr.f32.gmra.mrb[0].mxu0 %v1329
    %v1331 = vpop.f32.mrb[0].mxu0
    %v1332 = vadd.f32 %v1155, %v1331
    %v1333 = vpop.f32.mrb[0].mxu0
    %1334 = vmatprep.mubr.f32.mxu0 0.0
    %v1335 = vand.u32 %v98, 4294901760
    %1336 = vmatmul.mubr.f32.gmra.mrb[0].mxu0 %v1335
    %v1337 = vpop.f32.mrb[0].mxu0
    %v1338 = vadd.f32 %v1161, %v1337
    %v1339 = vpop.f32.mrb[0].mxu0
    %1340 = vmatprep.mubr.f32.mxu0 0.0
    %v1341 = vand.u32 %v99, 4294901760
    %1342 = vmatmul.mubr.f32.gmra.mrb[0].mxu0 %v1341
    %v1343 = vpop.f32.mrb[0].mxu0
    %v1344 = vadd.f32 %v1167, %v1343
    %v1345 = vpop.f32.mrb[0].mxu0
    %1346 = vmatprep.mubr.f32.mxu0 0.0
    %v1347 = vand.u32 %v100, 4294901760
    %1348 = vmatmul.mubr.f32.gmra.mrb[0].mxu0 %v1347
    %v1349 = vpop.f32.mrb[0].mxu0
    %v1350 = vadd.f32 %v1173, %v1349
    %v1351 = vpop.f32.mrb[0].mxu0
    %1352 = vmatprep.mubr.f32.mxu0 0.0
    %v1353 = vand.u32 %v101, 4294901760
    %1354 = vmatmul.mubr.f32.gmra.mrb[0].mxu0 %v1353
    %v1355 = vpop.f32.mrb[0].mxu0
    %v1356 = vadd.f32 %v1179, %v1355
    %v1357 = vpop.f32.mrb[0].mxu0
    %1358 = vmatprep.mubr.f32.mxu0 0.0
    %v1359 = vand.u32 %v102, 4294901760
    %1360 = vmatmul.mubr.f32.gmra.mrb[0].mxu0 %v1359
    %v1361 = vpop.f32.mrb[0].mxu0
    %v1362 = vadd.f32 %v1185, %v1361
    %v1363 = vpop.f32.mrb[0].mxu0
    %1364 = vmatprep.mubr.f32.mxu0 0.0
    %v1365 = vand.u32 %v103, 4294901760
    %1366 = vmatmul.mubr.f32.gmra.mrb[0].mxu0 %v1365
    %v1367 = vpop.f32.mrb[0].mxu0
    %v1368 = vadd.f32 %v1191, %v1367
    %v1369 = vpop.f32.mrb[0].mxu0
    %1370 = vmatprep.mubr.f32.mxu0 0.0
    %v1371 = vand.u32 %v104, 4294901760
    %1372 = vmatmul.mubr.f32.gmra.mrb[0].mxu0 %v1371
    %v1373 = vpop.f32.mrb[0].mxu0
    %v1374 = vadd.f32 %v1197, %v1373
    %v1375 = vpop.f32.mrb[0].mxu0
    %1376 = vmatprep.mubr.f32.mxu0 0.0
    %v1377 = vand.u32 %v105, 4294901760
    %1378 = vmatmul.mubr.f32.gmra.mrb[0].mxu0 %v1377
    %v1379 = vpop.f32.mrb[0].mxu0
    %v1380 = vadd.f32 %v1203, %v1379
    %v1381 = vpop.f32.mrb[0].mxu0
    %1382 = vmatprep.mubr.f32.mxu0 0.0
    %v1383 = vand.u32 %v106, 4294901760
    %1384 = vmatmul.mubr.f32.gmra.mrb[0].mxu0 %v1383
    %v1385 = vpop.f32.mrb[0].mxu0
    %v1386 = vadd.f32 %v1209, %v1385
    %v1387 = vpop.f32.mrb[0].mxu0
    %1388 = vmatprep.mubr.f32.mxu0 0.0
    %v1389 = vand.u32 %v107, 4294901760
    %1390 = vmatmul.mubr.f32.gmra.mrb[0].mxu0 %v1389
    %v1391 = vpop.f32.mrb[0].mxu0
    %v1392 = vadd.f32 %v1215, %v1391
    %v1393 = vpop.f32.mrb[0].mxu0
    %1394 = vmatprep.mubr.f32.mxu0 0.0
    %v1395 = vand.u32 %v108, 4294901760
    %1396 = vmatmul.mubr.f32.gmra.mrb[0].mxu0 %v1395
    %v1397 = vpop.f32.mrb[0].mxu0
    %v1398 = vadd.f32 %v1221, %v1397
    %v1399 = vpop.f32.mrb[0].mxu0
    %1400 = vmatprep.mubr.f32.mxu0 0.0
    %v1401 = vand.u32 %v109, 4294901760
    %1402 = vmatmul.mubr.f32.gmra.mrb[0].mxu0 %v1401
    %v1403 = vpop.f32.mrb[0].mxu0
    %v1404 = vadd.f32 %v1227, %v1403
    %v1405 = vpop.f32.mrb[0].mxu0
    %1406 = vmatprep.mubr.f32.mxu0 0.0
    %v1407 = vand.u32 %v110, 4294901760
    %1408 = vmatmul.mubr.f32.gmra.mrb[0].mxu0 %v1407
    %v1409 = vpop.f32.mrb[0].mxu0
    %v1410 = vadd.f32 %v1233, %v1409
    %v1411 = vpop.f32.mrb[0].mxu0
    %1412 = vdwg.mxu0
    %v1413 = vadd.f32 %v79, %v1320
    %v1414 = vadd.f32 %v80, %v1326
    %v1415 = vadd.f32 %v81, %v1332
    %v1416 = vadd.f32 %v82, %v1338
    %v1417 = vadd.f32 %v83, %v1344
    %v1418 = vadd.f32 %v84, %v1350
    %v1419 = vadd.f32 %v85, %v1356
    %v1420 = vadd.f32 %v86, %v1362
    %v1421 = vadd.f32 %v87, %v1368
    %v1422 = vadd.f32 %v88, %v1374
    %v1423 = vadd.f32 %v89, %v1380
    %v1424 = vadd.f32 %v90, %v1386
    %v1425 = vadd.f32 %v91, %v1392
    %v1426 = vadd.f32 %v92, %v1398
    %v1427 = vadd.f32 %v93, %v1404
    %v1428 = vadd.f32 %v94, %v1410
    %1429 = vst [vmem:[#allocation2] sm:$0xff] %v1413
    %1430 = vst [vmem:[#allocation2 + $0x8] sm:$0xff] %v1414
    %1431 = vst [vmem:[#allocation2 + $0x10] sm:$0xff] %v1415
    %1432 = vst [vmem:[#allocation2 + $0x18] sm:$0xff] %v1416
    %1433 = vst [vmem:[#allocation2 + $0x20] sm:$0xff] %v1417
    %1434 = vst [vmem:[#allocation2 + $0x28] sm:$0xff] %v1418
    %1435 = vst [vmem:[#allocation2 + $0x30] sm:$0xff] %v1419
    %1436 = vst [vmem:[#allocation2 + $0x38] sm:$0xff] %v1420
    %1437 = vst [vmem:[#allocation2 + $0x40] sm:$0xff] %v1421
    %1438 = vst [vmem:[#allocation2 + $0x48] sm:$0xff] %v1422
    %1439 = vst [vmem:[#allocation2 + $0x50] sm:$0xff] %v1423
    %1440 = vst [vmem:[#allocation2 + $0x58] sm:$0xff] %v1424
    %1441 = vst [vmem:[#allocation2 + $0x60] sm:$0xff] %v1425
    %1442 = vst [vmem:[#allocation2 + $0x68] sm:$0xff] %v1426
    %1443 = vst [vmem:[#allocation2 + $0x70] sm:$0xff] %v1427
    %1444 = vst [vmem:[#allocation2 + $0x78] sm:$0xff] %v1428
    // Predicated region
    $region34: #{tpu_custom_call.1} parent=1 // pred_check
      %p1445 = pneg %p59
    $region35: #{tpu_custom_call.1} parent=1 // pred_check_branch
      %1447 = sbr.rel (%p1445) target = $region37
    $region36: #{tpu_custom_call.1} parent=1 // pred_region
      %v1448 = vld [vmem:[#allocation2] sm:$0xff]
      %v1449 = vld [vmem:[#allocation2 + $0x8] sm:$0xff]
      %v1450 = vld [vmem:[#allocation2 + $0x10] sm:$0xff]
      %v1451 = vld [vmem:[#allocation2 + $0x18] sm:$0xff]
      %v1452 = vld [vmem:[#allocation2 + $0x20] sm:$0xff]
      %v1453 = vld [vmem:[#allocation2 + $0x28] sm:$0xff]
      %v1454 = vld [vmem:[#allocation2 + $0x30] sm:$0xff]
      %v1455 = vld [vmem:[#allocation2 + $0x38] sm:$0xff]
      %v1456 = vld [vmem:[#allocation2 + $0x40] sm:$0xff]
      %v1457 = vld [vmem:[#allocation2 + $0x48] sm:$0xff]
      %v1458 = vld [vmem:[#allocation2 + $0x50] sm:$0xff]
      %v1459 = vld [vmem:[#allocation2 + $0x58] sm:$0xff]
      %v1460 = vld [vmem:[#allocation2 + $0x60] sm:$0xff]
      %v1461 = vld [vmem:[#allocation2 + $0x68] sm:$0xff]
      %v1462 = vld [vmem:[#allocation2 + $0x70] sm:$0xff]
      %v1463 = vld [vmem:[#allocation2 + $0x78] sm:$0xff]
      %v1464 = vld [vmem:[#allocation8] sm:$0xff]
      %v1465 = vld [vmem:[#allocation8 + $0x8] sm:$0xff]
      %v1466 = vld [vmem:[#allocation8 + $0x10] sm:$0xff]
      %v1467 = vld [vmem:[#allocation8 + $0x18] sm:$0xff]
      %v1468 = vld [vmem:[#allocation8 + $0x20] sm:$0xff]
      %v1469 = vld [vmem:[#allocation8 + $0x28] sm:$0xff]
      %v1470 = vld [vmem:[#allocation8 + $0x30] sm:$0xff]
      %v1471 = vld [vmem:[#allocation8 + $0x38] sm:$0xff]
      %v1472 = vld [vmem:[#allocation8 + $0x40] sm:$0xff]
      %v1473 = vld [vmem:[#allocation8 + $0x48] sm:$0xff]
      %v1474 = vld [vmem:[#allocation8 + $0x50] sm:$0xff]
      %v1475 = vld [vmem:[#allocation8 + $0x58] sm:$0xff]
      %v1476 = vld [vmem:[#allocation8 + $0x60] sm:$0xff]
      %v1477 = vld [vmem:[#allocation8 + $0x68] sm:$0xff]
      %v1478 = vld [vmem:[#allocation8 + $0x70] sm:$0xff]
      %v1479 = vld [vmem:[#allocation8 + $0x78] sm:$0xff]
      %v1480 = vld [vmem:[%s3] sm:$0x1]
      %v1482 = vlaneseq
      %v1483 = vshrl.u32 %v1482, 7
      %v1484 = vsub.s32 0, %v1483
      %v1485 = vrot.slane %v1480, %v1484
      %1487 = vmatprep.subr.mxu0 0.0
      %v1488 = vand.u32 %v1464, 4294901760
      %1489 = vmatpush1.msra.mxu0 %v1488
      %1490 = vmatprep.subr.mxu0 0.0
      %v1491 = vand.u32 %v1465, 4294901760
      %1492 = vmatpush1.msra.mxu0 %v1491
      %1493 = vmatprep.subr.mxu0 0.0
      %v1494 = vand.u32 %v1466, 4294901760
      %1495 = vmatpush1.msra.mxu0 %v1494
      %1496 = vmatprep.subr.mxu0 0.0
      %v1497 = vand.u32 %v1467, 4294901760
      %1498 = vmatpush1.msra.mxu0 %v1497
      %1499 = vmatprep.subr.mxu0 0.0
      %v1500 = vand.u32 %v1468, 4294901760
      %1501 = vmatpush1.msra.mxu0 %v1500
      %1502 = vmatprep.subr.mxu0 0.0
      %v1503 = vand.u32 %v1469, 4294901760
      %1504 = vmatpush1.msra.mxu0 %v1503
      %1505 = vmatprep.subr.mxu0 0.0
      %v1506 = vand.u32 %v1470, 4294901760
      %1507 = vmatpush1.msra.mxu0 %v1506
      %1508 = vmatprep.subr.mxu0 0.0
      %v1509 = vand.u32 %v1471, 4294901760
      %1510 = vmatpush1.msra.mxu0 %v1509
      %1511 = vmatprep.subr.mxu0 0.0
      %v1512 = vand.u32 %v1472, 4294901760
      %1513 = vmatpush1.msra.mxu0 %v1512
      %1514 = vmatprep.subr.mxu0 0.0
      %v1515 = vand.u32 %v1473, 4294901760
      %1516 = vmatpush1.msra.mxu0 %v1515
      %1517 = vmatprep.subr.mxu0 0.0
      %v1518 = vand.u32 %v1474, 4294901760
      %1519 = vmatpush1.msra.mxu0 %v1518
      %1520 = vmatprep.subr.mxu0 0.0
      %v1521 = vand.u32 %v1475, 4294901760
      %1522 = vmatpush1.msra.mxu0 %v1521
      %1523 = vmatprep.subr.mxu0 0.0
      %v1524 = vand.u32 %v1476, 4294901760
      %1525 = vmatpush1.msra.mxu0 %v1524
      %1526 = vmatprep.subr.mxu0 0.0
      %v1527 = vand.u32 %v1477, 4294901760
      %1528 = vmatpush1.msra.mxu0 %v1527
      %1529 = vmatprep.subr.mxu0 0.0
      %v1530 = vand.u32 %v1478, 4294901760
      %1531 = vmatpush1.msra.mxu0 %v1530
      %1532 = vmatprep.subr.mxu0 0.0
      %v1533 = vand.u32 %v1479, 4294901760
      %1534 = vmatpush1.msra.mxu0 %v1533
      %1535 = vmatprep.subr.mxu0 0.0
      %1536 = vmatpush1.msra.mxu0 0.0
      %1537 = vmatprep.subr.mxu0 0.0
      %1538 = vmatpush1.msra.mxu0 0.0
      %1539 = vmatprep.subr.mxu0 0.0
      %1540 = vmatpush1.msra.mxu0 0.0
      %1541 = vmatprep.subr.mxu0 0.0
      %1542 = vmatpush1.msra.mxu0 0.0
      %1543 = vmatprep.subr.mxu0 0.0
      %1544 = vmatpush1.msra.mxu0 0.0
      %1545 = vmatprep.subr.mxu0 0.0
      %1546 = vmatpush1.msra.mxu0 0.0
      %1547 = vmatprep.subr.mxu0 0.0
      %1548 = vmatpush1.msra.mxu0 0.0
      %1549 = vmatprep.subr.mxu0 0.0
      %1550 = vmatpush1.msra.mxu0 0.0
      %1551 = vmatprep.subr.mxu0 0.0
      %1552 = vmatpush1.msra.mxu0 0.0
      %1553 = vmatprep.subr.mxu0 0.0
      %1554 = vmatpush1.msra.mxu0 0.0
      %1555 = vmatprep.subr.mxu0 0.0
      %1556 = vmatpush1.msra.mxu0 0.0
      %1557 = vmatprep.subr.mxu0 0.0
      %1558 = vmatpush1.msra.mxu0 0.0
      %1559 = vmatprep.subr.mxu0 0.0
      %1560 = vmatpush1.msra.mxu0 0.0
      %1561 = vmatprep.subr.mxu0 0.0
      %1562 = vmatpush1.msra.mxu0 0.0
      %1563 = vmatprep.subr.mxu0 0.0
      %1564 = vmatpush1.msra.mxu0 0.0
      %1565 = vmatprep.subr.mxu0 0.0
      %1566 = vmatpush1.msra.mxu0 0.0
      %1567 = vmatprep.mubr.f32.mxu0 0.0
      %v1568 = vand.u32 %v1448, 4294901760
      %v1569 = vsub.f32 %v1448, %v1568
      %v1570 = vand.u32 %v1569, 4294901760
      %v1571 = vsub.f32 %v1569, %v1570
      %v1572 = vand.u32 %v1571, 4294901760
      %1573 = vmatmul.mubr.f32.gmra.mrb[0].mxu0 %v1572
      %v1574 = vpop.f32.mrb[0].mxu0
      %v1575 = vadd.f32 %v1485, %v1574
      %v1576 = vpop.f32.mrb[0].mxu0
      %1577 = vmatprep.mubr.f32.mxu0 0.0
      %v1578 = vand.u32 %v1449, 4294901760
      %v1579 = vsub.f32 %v1449, %v1578
      %v1580 = vand.u32 %v1579, 4294901760
      %v1581 = vsub.f32 %v1579, %v1580
      %v1582 = vand.u32 %v1581, 4294901760
      %1583 = vmatmul.mubr.f32.gmra.mrb[0].mxu0 %v1582
      %v1584 = vpop.f32.mrb[0].mxu0
      %v1585 = vadd.f32 %v1485, %v1584
      %v1586 = vpop.f32.mrb[0].mxu0
      %1587 = vmatprep.mubr.f32.mxu0 0.0
      %v1588 = vand.u32 %v1450, 4294901760
      %v1589 = vsub.f32 %v1450, %v1588
      %v1590 = vand.u32 %v1589, 4294901760
      %v1591 = vsub.f32 %v1589, %v1590
      %v1592 = vand.u32 %v1591, 4294901760
      %1593 = vmatmul.mubr.f32.gmra.mrb[0].mxu0 %v1592
      %v1594 = vpop.f32.mrb[0].mxu0
      %v1595 = vadd.f32 %v1485, %v1594
      %v1596 = vpop.f32.mrb[0].mxu0
      %1597 = vmatprep.mubr.f32.mxu0 0.0
      %v1598 = vand.u32 %v1451, 4294901760
      %v1599 = vsub.f32 %v1451, %v1598
      %v1600 = vand.u32 %v1599, 4294901760
      %v1601 = vsub.f32 %v1599, %v1600
      %v1602 = vand.u32 %v1601, 4294901760
      %1603 = vmatmul.mubr.f32.gmra.mrb[0].mxu0 %v1602
      %v1604 = vpop.f32.mrb[0].mxu0
      %v1605 = vadd.f32 %v1485, %v1604
      %v1606 = vpop.f32.mrb[0].mxu0
      %1607 = vmatprep.mubr.f32.mxu0 0.0
      %v1608 = vand.u32 %v1452, 4294901760
      %v1609 = vsub.f32 %v1452, %v1608
      %v1610 = vand.u32 %v1609, 4294901760
      %v1611 = vsub.f32 %v1609, %v1610
      %v1612 = vand.u32 %v1611, 4294901760
      %1613 = vmatmul.mubr.f32.gmra.mrb[0].mxu0 %v1612
      %v1614 = vpop.f32.mrb[0].mxu0
      %v1615 = vadd.f32 %v1485, %v1614
      %v1616 = vpop.f32.mrb[0].mxu0
      %1617 = vmatprep.mubr.f32.mxu0 0.0
      %v1618 = vand.u32 %v1453, 4294901760
      %v1619 = vsub.f32 %v1453, %v1618
      %v1620 = vand.u32 %v1619, 4294901760
      %v1621 = vsub.f32 %v1619, %v1620
      %v1622 = vand.u32 %v1621, 4294901760
      %1623 = vmatmul.mubr.f32.gmra.mrb[0].mxu0 %v1622
      %v1624 = vpop.f32.mrb[0].mxu0
      %v1625 = vadd.f32 %v1485, %v1624
      %v1626 = vpop.f32.mrb[0].mxu0
      %1627 = vmatprep.mubr.f32.mxu0 0.0
      %v1628 = vand.u32 %v1454, 4294901760
      %v1629 = vsub.f32 %v1454, %v1628
      %v1630 = vand.u32 %v1629, 4294901760
      %v1631 = vsub.f32 %v1629, %v1630
      %v1632 = vand.u32 %v1631, 4294901760
      %1633 = vmatmul.mubr.f32.gmra.mrb[0].mxu0 %v1632
      %v1634 = vpop.f32.mrb[0].mxu0
      %v1635 = vadd.f32 %v1485, %v1634
      %v1636 = vpop.f32.mrb[0].mxu0
      %1637 = vmatprep.mubr.f32.mxu0 0.0
      %v1638 = vand.u32 %v1455, 4294901760
      %v1639 = vsub.f32 %v1455, %v1638
      %v1640 = vand.u32 %v1639, 4294901760
      %v1641 = vsub.f32 %v1639, %v1640
      %v1642 = vand.u32 %v1641, 4294901760
      %1643 = vmatmul.mubr.f32.gmra.mrb[0].mxu0 %v1642
      %v1644 = vpop.f32.mrb[0].mxu0
      %v1645 = vadd.f32 %v1485, %v1644
      %v1646 = vpop.f32.mrb[0].mxu0
      %1647 = vmatprep.mubr.f32.mxu0 0.0
      %v1648 = vand.u32 %v1456, 4294901760
      %v1649 = vsub.f32 %v1456, %v1648
      %v1650 = vand.u32 %v1649, 4294901760
      %v1651 = vsub.f32 %v1649, %v1650
      %v1652 = vand.u32 %v1651, 4294901760
      %1653 = vmatmul.mubr.f32.gmra.mrb[0].mxu0 %v1652
      %v1654 = vpop.f32.mrb[0].mxu0
      %v1655 = vadd.f32 %v1485, %v1654
      %v1656 = vpop.f32.mrb[0].mxu0
      %1657 = vmatprep.mubr.f32.mxu0 0.0
      %v1658 = vand.u32 %v1457, 4294901760
      %v1659 = vsub.f32 %v1457, %v1658
      %v1660 = vand.u32 %v1659, 4294901760
      %v1661 = vsub.f32 %v1659, %v1660
      %v1662 = vand.u32 %v1661, 4294901760
      %1663 = vmatmul.mubr.f32.gmra.mrb[0].mxu0 %v1662
      %v1664 = vpop.f32.mrb[0].mxu0
      %v1665 = vadd.f32 %v1485, %v1664
      %v1666 = vpop.f32.mrb[0].mxu0
      %1667 = vmatprep.mubr.f32.mxu0 0.0
      %v1668 = vand.u32 %v1458, 4294901760
      %v1669 = vsub.f32 %v1458, %v1668
      %v1670 = vand.u32 %v1669, 4294901760
      %v1671 = vsub.f32 %v1669, %v1670
      %v1672 = vand.u32 %v1671, 4294901760
      %1673 = vmatmul.mubr.f32.gmra.mrb[0].mxu0 %v1672
      %v1674 = vpop.f32.mrb[0].mxu0
      %v1675 = vadd.f32 %v1485, %v1674
      %v1676 = vpop.f32.mrb[0].mxu0
      %1677 = vmatprep.mubr.f32.mxu0 0.0
      %v1678 = vand.u32 %v1459, 4294901760
      %v1679 = vsub.f32 %v1459, %v1678
      %v1680 = vand.u32 %v1679, 4294901760
      %v1681 = vsub.f32 %v1679, %v1680
      %v1682 = vand.u32 %v1681, 4294901760
      %1683 = vmatmul.mubr.f32.gmra.mrb[0].mxu0 %v1682
      %v1684 = vpop.f32.mrb[0].mxu0
      %v1685 = vadd.f32 %v1485, %v1684
      %v1686 = vpop.f32.mrb[0].mxu0
      %1687 = vmatprep.mubr.f32.mxu0 0.0
      %v1688 = vand.u32 %v1460, 4294901760
      %v1689 = vsub.f32 %v1460, %v1688
      %v1690 = vand.u32 %v1689, 4294901760
      %v1691 = vsub.f32 %v1689, %v1690
      %v1692 = vand.u32 %v1691, 4294901760
      %1693 = vmatmul.mubr.f32.gmra.mrb[0].mxu0 %v1692
      %v1694 = vpop.f32.mrb[0].mxu0
      %v1695 = vadd.f32 %v1485, %v1694
      %v1696 = vpop.f32.mrb[0].mxu0
      %1697 = vmatprep.mubr.f32.mxu0 0.0
      %v1698 = vand.u32 %v1461, 4294901760
      %v1699 = vsub.f32 %v1461, %v1698
      %v1700 = vand.u32 %v1699, 4294901760
      %v1701 = vsub.f32 %v1699, %v1700
      %v1702 = vand.u32 %v1701, 4294901760
      %1703 = vmatmul.mubr.f32.gmra.mrb[0].mxu0 %v1702
      %v1704 = vpop.f32.mrb[0].mxu0
      %v1705 = vadd.f32 %v1485, %v1704
      %v1706 = vpop.f32.mrb[0].mxu0
      %1707 = vmatprep.mubr.f32.mxu0 0.0
      %v1708 = vand.u32 %v1462, 4294901760
      %v1709 = vsub.f32 %v1462, %v1708
      %v1710 = vand.u32 %v1709, 4294901760
      %v1711 = vsub.f32 %v1709, %v1710
      %v1712 = vand.u32 %v1711, 4294901760
      %1713 = vmatmul.mubr.f32.gmra.mrb[0].mxu0 %v1712
      %v1714 = vpop.f32.mrb[0].mxu0
      %v1715 = vadd.f32 %v1485, %v1714
      %v1716 = vpop.f32.mrb[0].mxu0
      %1717 = vmatprep.mubr.f32.mxu0 0.0
      %v1718 = vand.u32 %v1463, 4294901760
      %v1719 = vsub.f32 %v1463, %v1718
      %v1720 = vand.u32 %v1719, 4294901760
      %v1721 = vsub.f32 %v1719, %v1720
      %v1722 = vand.u32 %v1721, 4294901760
      %1723 = vmatmul.mubr.f32.gmra.mrb[0].mxu0 %v1722
      %v1724 = vpop.f32.mrb[0].mxu0
      %v1725 = vadd.f32 %v1485, %v1724
      %v1726 = vpop.f32.mrb[0].mxu0
      %1727 = vdwg.mxu0
      %1728 = vmatprep.subr.mxu0 0.0
      %v1729 = vand.u32 %v1464, 4294901760
      %v1730 = vsub.f32 %v1464, %v1729
      %v1731 = vand.u32 %v1730, 4294901760
      %v1732 = vsub.f32 %v1730, %v1731
      %v1733 = vand.u32 %v1732, 4294901760
      %1734 = vmatpush1.msra.mxu0 %v1733
      %1735 = vmatprep.subr.mxu0 0.0
      %v1736 = vand.u32 %v1465, 4294901760
      %v1737 = vsub.f32 %v1465, %v1736
      %v1738 = vand.u32 %v1737, 4294901760
      %v1739 = vsub.f32 %v1737, %v1738
      %v1740 = vand.u32 %v1739, 4294901760
      %1741 = vmatpush1.msra.mxu0 %v1740
      %1742 = vmatprep.subr.mxu0 0.0
      %v1743 = vand.u32 %v1466, 4294901760
      %v1744 = vsub.f32 %v1466, %v1743
      %v1745 = vand.u32 %v1744, 4294901760
      %v1746 = vsub.f32 %v1744, %v1745
      %v1747 = vand.u32 %v1746, 4294901760
      %1748 = vmatpush1.msra.mxu0 %v1747
      %1749 = vmatprep.subr.mxu0 0.0
      %v1750 = vand.u32 %v1467, 4294901760
      %v1751 = vsub.f32 %v1467, %v1750
      %v1752 = vand.u32 %v1751, 4294901760
      %v1753 = vsub.f32 %v1751, %v1752
      %v1754 = vand.u32 %v1753, 4294901760
      %1755 = vmatpush1.msra.mxu0 %v1754
      %1756 = vmatprep.subr.mxu0 0.0
      %v1757 = vand.u32 %v1468, 4294901760
      %v1758 = vsub.f32 %v1468, %v1757
      %v1759 = vand.u32 %v1758, 4294901760
      %v1760 = vsub.f32 %v1758, %v1759
      %v1761 = vand.u32 %v1760, 4294901760
      %1762 = vmatpush1.msra.mxu0 %v1761
      %1763 = vmatprep.subr.mxu0 0.0
      %v1764 = vand.u32 %v1469, 4294901760
      %v1765 = vsub.f32 %v1469, %v1764
      %v1766 = vand.u32 %v1765, 4294901760
      %v1767 = vsub.f32 %v1765, %v1766
      %v1768 = vand.u32 %v1767, 4294901760
      %1769 = vmatpush1.msra.mxu0 %v1768
      %1770 = vmatprep.subr.mxu0 0.0
      %v1771 = vand.u32 %v1470, 4294901760
      %v1772 = vsub.f32 %v1470, %v1771
      %v1773 = vand.u32 %v1772, 4294901760
      %v1774 = vsub.f32 %v1772, %v1773
      %v1775 = vand.u32 %v1774, 4294901760
      %1776 = vmatpush1.msra.mxu0 %v1775
      %1777 = vmatprep.subr.mxu0 0.0
      %v1778 = vand.u32 %v1471, 4294901760
      %v1779 = vsub.f32 %v1471, %v1778
      %v1780 = vand.u32 %v1779, 4294901760
      %v1781 = vsub.f32 %v1779, %v1780
      %v1782 = vand.u32 %v1781, 4294901760
      %1783 = vmatpush1.msra.mxu0 %v1782
      %1784 = vmatprep.subr.mxu0 0.0
      %v1785 = vand.u32 %v1472, 4294901760
      %v1786 = vsub.f32 %v1472, %v1785
      %v1787 = vand.u32 %v1786, 4294901760
      %v1788 = vsub.f32 %v1786, %v1787
      %v1789 = vand.u32 %v1788, 4294901760
      %1790 = vmatpush1.msra.mxu0 %v1789
      %1791 = vmatprep.subr.mxu0 0.0
      %v1792 = vand.u32 %v1473, 4294901760
      %v1793 = vsub.f32 %v1473, %v1792
      %v1794 = vand.u32 %v1793, 4294901760
      %v1795 = vsub.f32 %v1793, %v1794
      %v1796 = vand.u32 %v1795, 4294901760
      %1797 = vmatpush1.msra.mxu0 %v1796
      %1798 = vmatprep.subr.mxu0 0.0
      %v1799 = vand.u32 %v1474, 4294901760
      %v1800 = vsub.f32 %v1474, %v1799
      %v1801 = vand.u32 %v1800, 4294901760
      %v1802 = vsub.f32 %v1800, %v1801
      %v1803 = vand.u32 %v1802, 4294901760
      %1804 = vmatpush1.msra.mxu0 %v1803
      %1805 = vmatprep.subr.mxu0 0.0
      %v1806 = vand.u32 %v1475, 4294901760
      %v1807 = vsub.f32 %v1475, %v1806
      %v1808 = vand.u32 %v1807, 4294901760
      %v1809 = vsub.f32 %v1807, %v1808
      %v1810 = vand.u32 %v1809, 4294901760
      %1811 = vmatpush1.msra.mxu0 %v1810
      %1812 = vmatprep.subr.mxu0 0.0
      %v1813 = vand.u32 %v1476, 4294901760
      %v1814 = vsub.f32 %v1476, %v1813
      %v1815 = vand.u32 %v1814, 4294901760
      %v1816 = vsub.f32 %v1814, %v1815
      %v1817 = vand.u32 %v1816, 4294901760
      %1818 = vmatpush1.msra.mxu0 %v1817
      %1819 = vmatprep.subr.mxu0 0.0
      %v1820 = vand.u32 %v1477, 4294901760
      %v1821 = vsub.f32 %v1477, %v1820
      %v1822 = vand.u32 %v1821, 4294901760
      %v1823 = vsub.f32 %v1821, %v1822
      %v1824 = vand.u32 %v1823, 4294901760
      %1825 = vmatpush1.msra.mxu0 %v1824
      %1826 = vmatprep.subr.mxu0 0.0
      %v1827 = vand.u32 %v1478, 4294901760
      %v1828 = vsub.f32 %v1478, %v1827
      %v1829 = vand.u32 %v1828, 4294901760
      %v1830 = vsub.f32 %v1828, %v1829
      %v1831 = vand.u32 %v1830, 4294901760
      %1832 = vmatpush1.msra.mxu0 %v1831
      %1833 = vmatprep.subr.mxu0 0.0
      %v1834 = vand.u32 %v1479, 4294901760
      %v1835 = vsub.f32 %v1479, %v1834
      %v1836 = vand.u32 %v1835, 4294901760
      %v1837 = vsub.f32 %v1835, %v1836
      %v1838 = vand.u32 %v1837, 4294901760
      %1839 = vmatpush1.msra.mxu0 %v1838
      %1840 = vmatprep.subr.mxu0 0.0
      %1841 = vmatpush1.msra.mxu0 0.0
      %1842 = vmatprep.subr.mxu0 0.0
      %1843 = vmatpush1.msra.mxu0 0.0
      %1844 = vmatprep.subr.mxu0 0.0
      %1845 = vmatpush1.msra.mxu0 0.0
      %1846 = vmatprep.subr.mxu0 0.0
      %1847 = vmatpush1.msra.mxu0 0.0
      %1848 = vmatprep.subr.mxu0 0.0
      %1849 = vmatpush1.msra.mxu0 0.0
      %1850 = vmatprep.subr.mxu0 0.0
      %1851 = vmatpush1.msra.mxu0 0.0
      %1852 = vmatprep.subr.mxu0 0.0
      %1853 = vmatpush1.msra.mxu0 0.0
      %1854 = vmatprep.subr.mxu0 0.0
      %1855 = vmatpush1.msra.mxu0 0.0
      %1856 = vmatprep.subr.mxu0 0.0
      %1857 = vmatpush1.msra.mxu0 0.0
      %1858 = vmatprep.subr.mxu0 0.0
      %1859 = vmatpush1.msra.mxu0 0.0
      %1860 = vmatprep.subr.mxu0 0.0
      %1861 = vmatpush1.msra.mxu0 0.0
      %1862 = vmatprep.subr.mxu0 0.0
      %1863 = vmatpush1.msra.mxu0 0.0
      %1864 = vmatprep.subr.mxu0 0.0
      %1865 = vmatpush1.msra.mxu0 0.0
      %1866 = vmatprep.subr.mxu0 0.0
      %1867 = vmatpush1.msra.mxu0 0.0
      %1868 = vmatprep.subr.mxu0 0.0
      %1869 = vmatpush1.msra.mxu0 0.0
      %1870 = vmatprep.subr.mxu0 0.0
      %1871 = vmatpush1.msra.mxu0 0.0
      %1872 = vmatprep.mubr.f32.mxu0 0.0
      %v1873 = vand.u32 %v1448, 4294901760
      %1874 = vmatmul.mubr.f32.gmra.mrb[0].mxu0 %v1873
      %v1875 = vpop.f32.mrb[0].mxu0
      %v1876 = vadd.f32 %v1575, %v1875
      %v1877 = vpop.f32.mrb[0].mxu0
      %1878 = vmatprep.mubr.f32.mxu0 0.0
      %v1879 = vand.u32 %v1449, 4294901760
      %1880 = vmatmul.mubr.f32.gmra.mrb[0].mxu0 %v1879
      %v1881 = vpop.f32.mrb[0].mxu0
      %v1882 = vadd.f32 %v1585, %v1881
      %v1883 = vpop.f32.mrb[0].mxu0
      %1884 = vmatprep.mubr.f32.mxu0 0.0
      %v1885 = vand.u32 %v1450, 4294901760
      %1886 = vmatmul.mubr.f32.gmra.mrb[0].mxu0 %v1885
      %v1887 = vpop.f32.mrb[0].mxu0
      %v1888 = vadd.f32 %v1595, %v1887
      %v1889 = vpop.f32.mrb[0].mxu0
      %1890 = vmatprep.mubr.f32.mxu0 0.0
      %v1891 = vand.u32 %v1451, 4294901760
      %1892 = vmatmul.mubr.f32.gmra.mrb[0].mxu0 %v1891
      %v1893 = vpop.f32.mrb[0].mxu0
      %v1894 = vadd.f32 %v1605, %v1893
      %v1895 = vpop.f32.mrb[0].mxu0
      %1896 = vmatprep.mubr.f32.mxu0 0.0
      %v1897 = vand.u32 %v1452, 4294901760
      %1898 = vmatmul.mubr.f32.gmra.mrb[0].mxu0 %v1897
      %v1899 = vpop.f32.mrb[0].mxu0
      %v1900 = vadd.f32 %v1615, %v1899
      %v1901 = vpop.f32.mrb[0].mxu0
      %1902 = vmatprep.mubr.f32.mxu0 0.0
      %v1903 = vand.u32 %v1453, 4294901760
      %1904 = vmatmul.mubr.f32.gmra.mrb[0].mxu0 %v1903
      %v1905 = vpop.f32.mrb[0].mxu0
      %v1906 = vadd.f32 %v1625, %v1905
      %v1907 = vpop.f32.mrb[0].mxu0
      %1908 = vmatprep.mubr.f32.mxu0 0.0
      %v1909 = vand.u32 %v1454, 4294901760
      %1910 = vmatmul.mubr.f32.gmra.mrb[0].mxu0 %v1909
      %v1911 = vpop.f32.mrb[0].mxu0
      %v1912 = vadd.f32 %v1635, %v1911
      %v1913 = vpop.f32.mrb[0].mxu0
      %1914 = vmatprep.mubr.f32.mxu0 0.0
      %v1915 = vand.u32 %v1455, 4294901760
      %1916 = vmatmul.mubr.f32.gmra.mrb[0].mxu0 %v1915
      %v1917 = vpop.f32.mrb[0].mxu0
      %v1918 = vadd.f32 %v1645, %v1917
      %v1919 = vpop.f32.mrb[0].mxu0
      %1920 = vmatprep.mubr.f32.mxu0 0.0
      %v1921 = vand.u32 %v1456, 4294901760
      %1922 = vmatmul.mubr.f32.gmra.mrb[0].mxu0 %v1921
      %v1923 = vpop.f32.mrb[0].mxu0
      %v1924 = vadd.f32 %v1655, %v1923
      %v1925 = vpop.f32.mrb[0].mxu0
      %1926 = vmatprep.mubr.f32.mxu0 0.0
      %v1927 = vand.u32 %v1457, 4294901760
      %1928 = vmatmul.mubr.f32.gmra.mrb[0].mxu0 %v1927
      %v1929 = vpop.f32.mrb[0].mxu0
      %v1930 = vadd.f32 %v1665, %v1929
      %v1931 = vpop.f32.mrb[0].mxu0
      %1932 = vmatprep.mubr.f32.mxu0 0.0
      %v1933 = vand.u32 %v1458, 4294901760
      %1934 = vmatmul.mubr.f32.gmra.mrb[0].mxu0 %v1933
      %v1935 = vpop.f32.mrb[0].mxu0
      %v1936 = vadd.f32 %v1675, %v1935
      %v1937 = vpop.f32.mrb[0].mxu0
      %1938 = vmatprep.mubr.f32.mxu0 0.0
      %v1939 = vand.u32 %v1459, 4294901760
      %1940 = vmatmul.mubr.f32.gmra.mrb[0].mxu0 %v1939
      %v1941 = vpop.f32.mrb[0].mxu0
      %v1942 = vadd.f32 %v1685, %v1941
      %v1943 = vpop.f32.mrb[0].mxu0
      %1944 = vmatprep.mubr.f32.mxu0 0.0
      %v1945 = vand.u32 %v1460, 4294901760
      %1946 = vmatmul.mubr.f32.gmra.mrb[0].mxu0 %v1945
      %v1947 = vpop.f32.mrb[0].mxu0
      %v1948 = vadd.f32 %v1695, %v1947
      %v1949 = vpop.f32.mrb[0].mxu0
      %1950 = vmatprep.mubr.f32.mxu0 0.0
      %v1951 = vand.u32 %v1461, 4294901760
      %1952 = vmatmul.mubr.f32.gmra.mrb[0].mxu0 %v1951
      %v1953 = vpop.f32.mrb[0].mxu0
      %v1954 = vadd.f32 %v1705, %v1953
      %v1955 = vpop.f32.mrb[0].mxu0
      %1956 = vmatprep.mubr.f32.mxu0 0.0
      %v1957 = vand.u32 %v1462, 4294901760
      %1958 = vmatmul.mubr.f32.gmra.mrb[0].mxu0 %v1957
      %v1959 = vpop.f32.mrb[0].mxu0
      %v1960 = vadd.f32 %v1715, %v1959
      %v1961 = vpop.f32.mrb[0].mxu0
      %1962 = vmatprep.mubr.f32.mxu0 0.0
      %v1963 = vand.u32 %v1463, 4294901760
      %1964 = vmatmul.mubr.f32.gmra.mrb[0].mxu0 %v1963
      %v1965 = vpop.f32.mrb[0].mxu0
      %v1966 = vadd.f32 %v1725, %v1965
      %v1967 = vpop.f32.mrb[0].mxu0
      %1968 = vdwg.mxu0
      %1969 = vmatprep.subr.mxu0 0.0
      %v1970 = vand.u32 %v1464, 4294901760
      %v1971 = vsub.f32 %v1464, %v1970
      %1972 = vmatpush1.msra.mxu0 %v1971
      %1973 = vmatprep.subr.mxu0 0.0
      %v1974 = vand.u32 %v1465, 4294901760
      %v1975 = vsub.f32 %v1465, %v1974
      %1976 = vmatpush1.msra.mxu0 %v1975
      %1977 = vmatprep.subr.mxu0 0.0
      %v1978 = vand.u32 %v1466, 4294901760
      %v1979 = vsub.f32 %v1466, %v1978
      %1980 = vmatpush1.msra.mxu0 %v1979
      %1981 = vmatprep.subr.mxu0 0.0
      %v1982 = vand.u32 %v1467, 4294901760
      %v1983 = vsub.f32 %v1467, %v1982
      %1984 = vmatpush1.msra.mxu0 %v1983
      %1985 = vmatprep.subr.mxu0 0.0
      %v1986 = vand.u32 %v1468, 4294901760
      %v1987 = vsub.f32 %v1468, %v1986
      %1988 = vmatpush1.msra.mxu0 %v1987
      %1989 = vmatprep.subr.mxu0 0.0
      %v1990 = vand.u32 %v1469, 4294901760
      %v1991 = vsub.f32 %v1469, %v1990
      %1992 = vmatpush1.msra.mxu0 %v1991
      %1993 = vmatprep.subr.mxu0 0.0
      %v1994 = vand.u32 %v1470, 4294901760
      %v1995 = vsub.f32 %v1470, %v1994
      %1996 = vmatpush1.msra.mxu0 %v1995
      %1997 = vmatprep.subr.mxu0 0.0
      %v1998 = vand.u32 %v1471, 4294901760
      %v1999 = vsub.f32 %v1471, %v1998
      %2000 = vmatpush1.msra.mxu0 %v1999
      %2001 = vmatprep.subr.mxu0 0.0
      %v2002 = vand.u32 %v1472, 4294901760
      %v2003 = vsub.f32 %v1472, %v2002
      %2004 = vmatpush1.msra.mxu0 %v2003
      %2005 = vmatprep.subr.mxu0 0.0
      %v2006 = vand.u32 %v1473, 4294901760
      %v2007 = vsub.f32 %v1473, %v2006
      %2008 = vmatpush1.msra.mxu0 %v2007
      %2009 = vmatprep.subr.mxu0 0.0
      %v2010 = vand.u32 %v1474, 4294901760
      %v2011 = vsub.f32 %v1474, %v2010
      %2012 = vmatpush1.msra.mxu0 %v2011
      %2013 = vmatprep.subr.mxu0 0.0
      %v2014 = vand.u32 %v1475, 4294901760
      %v2015 = vsub.f32 %v1475, %v2014
      %2016 = vmatpush1.msra.mxu0 %v2015
      %2017 = vmatprep.subr.mxu0 0.0
      %v2018 = vand.u32 %v1476, 4294901760
      %v2019 = vsub.f32 %v1476, %v2018
      %2020 = vmatpush1.msra.mxu0 %v2019
      %2021 = vmatprep.subr.mxu0 0.0
      %v2022 = vand.u32 %v1477, 4294901760
      %v2023 = vsub.f32 %v1477, %v2022
      %2024 = vmatpush1.msra.mxu0 %v2023
      %2025 = vmatprep.subr.mxu0 0.0
      %v2026 = vand.u32 %v1478, 4294901760
      %v2027 = vsub.f32 %v1478, %v2026
      %2028 = vmatpush1.msra.mxu0 %v2027
      %2029 = vmatprep.subr.mxu0 0.0
      %v2030 = vand.u32 %v1479, 4294901760
      %v2031 = vsub.f32 %v1479, %v2030
      %2032 = vmatpush1.msra.mxu0 %v2031
      %2033 = vmatprep.subr.mxu0 0.0
      %2034 = vmatpush1.msra.mxu0 0.0
      %2035 = vmatprep.subr.mxu0 0.0
      %2036 = vmatpush1.msra.mxu0 0.0
      %2037 = vmatprep.subr.mxu0 0.0
      %2038 = vmatpush1.msra.mxu0 0.0
      %2039 = vmatprep.subr.mxu0 0.0
      %2040 = vmatpush1.msra.mxu0 0.0
      %2041 = vmatprep.subr.mxu0 0.0
      %2042 = vmatpush1.msra.mxu0 0.0
      %2043 = vmatprep.subr.mxu0 0.0
      %2044 = vmatpush1.msra.mxu0 0.0
      %2045 = vmatprep.subr.mxu0 0.0
      %2046 = vmatpush1.msra.mxu0 0.0
      %2047 = vmatprep.subr.mxu0 0.0
      %2048 = vmatpush1.msra.mxu0 0.0
      %2049 = vmatprep.subr.mxu0 0.0
      %2050 = vmatpush1.msra.mxu0 0.0
      %2051 = vmatprep.subr.mxu0 0.0
      %2052 = vmatpush1.msra.mxu0 0.0
      %2053 = vmatprep.subr.mxu0 0.0
      %2054 = vmatpush1.msra.mxu0 0.0
      %2055 = vmatprep.subr.mxu0 0.0
      %2056 = vmatpush1.msra.mxu0 0.0
      %2057 = vmatprep.subr.mxu0 0.0
      %2058 = vmatpush1.msra.mxu0 0.0
      %2059 = vmatprep.subr.mxu0 0.0
      %2060 = vmatpush1.msra.mxu0 0.0
      %2061 = vmatprep.subr.mxu0 0.0
      %2062 = vmatpush1.msra.mxu0 0.0
      %2063 = vmatprep.subr.mxu0 0.0
      %2064 = vmatpush1.msra.mxu0 0.0
      %2065 = vmatprep.mubr.f32.mxu0 0.0
      %v2066 = vand.u32 %v1448, 4294901760
      %v2067 = vsub.f32 %v1448, %v2066
      %2068 = vmatmul.mubr.f32.gmra.mrb[0].mxu0 %v2067
      %v2069 = vpop.f32.mrb[0].mxu0
      %v2070 = vadd.f32 %v1876, %v2069
      %v2071 = vpop.f32.mrb[0].mxu0
      %2072 = vmatprep.mubr.f32.mxu0 0.0
      %v2073 = vand.u32 %v1449, 4294901760
      %v2074 = vsub.f32 %v1449, %v2073
      %2075 = vmatmul.mubr.f32.gmra.mrb[0].mxu0 %v2074
      %v2076 = vpop.f32.mrb[0].mxu0
      %v2077 = vadd.f32 %v1882, %v2076
      %v2078 = vpop.f32.mrb[0].mxu0
      %2079 = vmatprep.mubr.f32.mxu0 0.0
      %v2080 = vand.u32 %v1450, 4294901760
      %v2081 = vsub.f32 %v1450, %v2080
      %2082 = vmatmul.mubr.f32.gmra.mrb[0].mxu0 %v2081
      %v2083 = vpop.f32.mrb[0].mxu0
      %v2084 = vadd.f32 %v1888, %v2083
      %v2085 = vpop.f32.mrb[0].mxu0
      %2086 = vmatprep.mubr.f32.mxu0 0.0
      %v2087 = vand.u32 %v1451, 4294901760
      %v2088 = vsub.f32 %v1451, %v2087
      %2089 = vmatmul.mubr.f32.gmra.mrb[0].mxu0 %v2088
      %v2090 = vpop.f32.mrb[0].mxu0
      %v2091 = vadd.f32 %v1894, %v2090
      %v2092 = vpop.f32.mrb[0].mxu0
      %2093 = vmatprep.mubr.f32.mxu0 0.0
      %v2094 = vand.u32 %v1452, 4294901760
      %v2095 = vsub.f32 %v1452, %v2094
      %2096 = vmatmul.mubr.f32.gmra.mrb[0].mxu0 %v2095
      %v2097 = vpop.f32.mrb[0].mxu0
      %v2098 = vadd.f32 %v1900, %v2097
      %v2099 = vpop.f32.mrb[0].mxu0
      %2100 = vmatprep.mubr.f32.mxu0 0.0
      %v2101 = vand.u32 %v1453, 4294901760
      %v2102 = vsub.f32 %v1453, %v2101
      %2103 = vmatmul.mubr.f32.gmra.mrb[0].mxu0 %v2102
      %v2104 = vpop.f32.mrb[0].mxu0
      %v2105 = vadd.f32 %v1906, %v2104
      %v2106 = vpop.f32.mrb[0].mxu0
      %2107 = vmatprep.mubr.f32.mxu0 0.0
      %v2108 = vand.u32 %v1454, 4294901760
      %v2109 = vsub.f32 %v1454, %v2108
      %2110 = vmatmul.mubr.f32.gmra.mrb[0].mxu0 %v2109
      %v2111 = vpop.f32.mrb[0].mxu0
      %v2112 = vadd.f32 %v1912, %v2111
      %v2113 = vpop.f32.mrb[0].mxu0
      %2114 = vmatprep.mubr.f32.mxu0 0.0
      %v2115 = vand.u32 %v1455, 4294901760
      %v2116 = vsub.f32 %v1455, %v2115
      %2117 = vmatmul.mubr.f32.gmra.mrb[0].mxu0 %v2116
      %v2118 = vpop.f32.mrb[0].mxu0
      %v2119 = vadd.f32 %v1918, %v2118
      %v2120 = vpop.f32.mrb[0].mxu0
      %2121 = vmatprep.mubr.f32.mxu0 0.0
      %v2122 = vand.u32 %v1456, 4294901760
      %v2123 = vsub.f32 %v1456, %v2122
      %2124 = vmatmul.mubr.f32.gmra.mrb[0].mxu0 %v2123
      %v2125 = vpop.f32.mrb[0].mxu0
      %v2126 = vadd.f32 %v1924, %v2125
      %v2127 = vpop.f32.mrb[0].mxu0
      %2128 = vmatprep.mubr.f32.mxu0 0.0
      %v2129 = vand.u32 %v1457, 4294901760
      %v2130 = vsub.f32 %v1457, %v2129
      %2131 = vmatmul.mubr.f32.gmra.mrb[0].mxu0 %v2130
      %v2132 = vpop.f32.mrb[0].mxu0
      %v2133 = vadd.f32 %v1930, %v2132
      %v2134 = vpop.f32.mrb[0].mxu0
      %2135 = vmatprep.mubr.f32.mxu0 0.0
      %v2136 = vand.u32 %v1458, 4294901760
      %v2137 = vsub.f32 %v1458, %v2136
      %2138 = vmatmul.mubr.f32.gmra.mrb[0].mxu0 %v2137
      %v2139 = vpop.f32.mrb[0].mxu0
      %v2140 = vadd.f32 %v1936, %v2139
      %v2141 = vpop.f32.mrb[0].mxu0
      %2142 = vmatprep.mubr.f32.mxu0 0.0
      %v2143 = vand.u32 %v1459, 4294901760
      %v2144 = vsub.f32 %v1459, %v2143
      %2145 = vmatmul.mubr.f32.gmra.mrb[0].mxu0 %v2144
      %v2146 = vpop.f32.mrb[0].mxu0
      %v2147 = vadd.f32 %v1942, %v2146
      %v2148 = vpop.f32.mrb[0].mxu0
      %2149 = vmatprep.mubr.f32.mxu0 0.0
      %v2150 = vand.u32 %v1460, 4294901760
      %v2151 = vsub.f32 %v1460, %v2150
      %2152 = vmatmul.mubr.f32.gmra.mrb[0].mxu0 %v2151
      %v2153 = vpop.f32.mrb[0].mxu0
      %v2154 = vadd.f32 %v1948, %v2153
      %v2155 = vpop.f32.mrb[0].mxu0
      %2156 = vmatprep.mubr.f32.mxu0 0.0
      %v2157 = vand.u32 %v1461, 4294901760
      %v2158 = vsub.f32 %v1461, %v2157
      %2159 = vmatmul.mubr.f32.gmra.mrb[0].mxu0 %v2158
      %v2160 = vpop.f32.mrb[0].mxu0
      %v2161 = vadd.f32 %v1954, %v2160
      %v2162 = vpop.f32.mrb[0].mxu0
      %2163 = vmatprep.mubr.f32.mxu0 0.0
      %v2164 = vand.u32 %v1462, 4294901760
      %v2165 = vsub.f32 %v1462, %v2164
      %2166 = vmatmul.mubr.f32.gmra.mrb[0].mxu0 %v2165
      %v2167 = vpop.f32.mrb[0].mxu0
      %v2168 = vadd.f32 %v1960, %v2167
      %v2169 = vpop.f32.mrb[0].mxu0
      %2170 = vmatprep.mubr.f32.mxu0 0.0
      %v2171 = vand.u32 %v1463, 4294901760
      %v2172 = vsub.f32 %v1463, %v2171
      %2173 = vmatmul.mubr.f32.gmra.mrb[0].mxu0 %v2172
      %v2174 = vpop.f32.mrb[0].mxu0
      %v2175 = vadd.f32 %v1966, %v2174
      %v2176 = vpop.f32.mrb[0].mxu0
      %2177 = vdwg.mxu0
      %2178 = vmatprep.subr.mxu0 0.0
      %v2179 = vand.u32 %v1464, 4294901760
      %2180 = vmatpush1.msra.mxu0 %v2179
      %2181 = vmatprep.subr.mxu0 0.0
      %v2182 = vand.u32 %v1465, 4294901760
      %2183 = vmatpush1.msra.mxu0 %v2182
      %2184 = vmatprep.subr.mxu0 0.0
      %v2185 = vand.u32 %v1466, 4294901760
      %2186 = vmatpush1.msra.mxu0 %v2185
      %2187 = vmatprep.subr.mxu0 0.0
      %v2188 = vand.u32 %v1467, 4294901760
      %2189 = vmatpush1.msra.mxu0 %v2188
      %2190 = vmatprep.subr.mxu0 0.0
      %v2191 = vand.u32 %v1468, 4294901760
      %2192 = vmatpush1.msra.mxu0 %v2191
      %2193 = vmatprep.subr.mxu0 0.0
      %v2194 = vand.u32 %v1469, 4294901760
      %2195 = vmatpush1.msra.mxu0 %v2194
      %2196 = vmatprep.subr.mxu0 0.0
      %v2197 = vand.u32 %v1470, 4294901760
      %2198 = vmatpush1.msra.mxu0 %v2197
      %2199 = vmatprep.subr.mxu0 0.0
      %v2200 = vand.u32 %v1471, 4294901760
      %2201 = vmatpush1.msra.mxu0 %v2200
      %2202 = vmatprep.subr.mxu0 0.0
      %v2203 = vand.u32 %v1472, 4294901760
      %2204 = vmatpush1.msra.mxu0 %v2203
      %2205 = vmatprep.subr.mxu0 0.0
      %v2206 = vand.u32 %v1473, 4294901760
      %2207 = vmatpush1.msra.mxu0 %v2206
      %2208 = vmatprep.subr.mxu0 0.0
      %v2209 = vand.u32 %v1474, 4294901760
      %2210 = vmatpush1.msra.mxu0 %v2209
      %2211 = vmatprep.subr.mxu0 0.0
      %v2212 = vand.u32 %v1475, 4294901760
      %2213 = vmatpush1.msra.mxu0 %v2212
      %2214 = vmatprep.subr.mxu0 0.0
      %v2215 = vand.u32 %v1476, 4294901760
      %2216 = vmatpush1.msra.mxu0 %v2215
      %2217 = vmatprep.subr.mxu0 0.0
      %v2218 = vand.u32 %v1477, 4294901760
      %2219 = vmatpush1.msra.mxu0 %v2218
      %2220 = vmatprep.subr.mxu0 0.0
      %v2221 = vand.u32 %v1478, 4294901760
      %2222 = vmatpush1.msra.mxu0 %v2221
      %2223 = vmatprep.subr.mxu0 0.0
      %v2224 = vand.u32 %v1479, 4294901760
      %2225 = vmatpush1.msra.mxu0 %v2224
      %2226 = vmatprep.subr.mxu0 0.0
      %2227 = vmatpush1.msra.mxu0 0.0
      %2228 = vmatprep.subr.mxu0 0.0
      %2229 = vmatpush1.msra.mxu0 0.0
      %2230 = vmatprep.subr.mxu0 0.0
      %2231 = vmatpush1.msra.mxu0 0.0
      %2232 = vmatprep.subr.mxu0 0.0
      %2233 = vmatpush1.msra.mxu0 0.0
      %2234 = vmatprep.subr.mxu0 0.0
      %2235 = vmatpush1.msra.mxu0 0.0
      %2236 = vmatprep.subr.mxu0 0.0
      %2237 = vmatpush1.msra.mxu0 0.0
      %2238 = vmatprep.subr.mxu0 0.0
      %2239 = vmatpush1.msra.mxu0 0.0
      %2240 = vmatprep.subr.mxu0 0.0
      %2241 = vmatpush1.msra.mxu0 0.0
      %2242 = vmatprep.subr.mxu0 0.0
      %2243 = vmatpush1.msra.mxu0 0.0
      %2244 = vmatprep.subr.mxu0 0.0
      %2245 = vmatpush1.msra.mxu0 0.0
      %2246 = vmatprep.subr.mxu0 0.0
      %2247 = vmatpush1.msra.mxu0 0.0
      %2248 = vmatprep.subr.mxu0 0.0
      %2249 = vmatpush1.msra.mxu0 0.0
      %2250 = vmatprep.subr.mxu0 0.0
      %2251 = vmatpush1.msra.mxu0 0.0
      %2252 = vmatprep.subr.mxu0 0.0
      %2253 = vmatpush1.msra.mxu0 0.0
      %2254 = vmatprep.subr.mxu0 0.0
      %2255 = vmatpush1.msra.mxu0 0.0
      %2256 = vmatprep.subr.mxu0 0.0
      %2257 = vmatpush1.msra.mxu0 0.0
      %2258 = vmatprep.mubr.f32.mxu0 0.0
      %v2259 = vand.u32 %v1448, 4294901760
      %v2260 = vsub.f32 %v1448, %v2259
      %v2261 = vand.u32 %v2260, 4294901760
      %2262 = vmatmul.mubr.f32.gmra.mrb[0].mxu0 %v2261
      %v2263 = vpop.f32.mrb[0].mxu0
      %v2264 = vadd.f32 %v2070, %v2263
      %v2265 = vpop.f32.mrb[0].mxu0
      %2266 = vmatprep.mubr.f32.mxu0 0.0
      %v2267 = vand.u32 %v1449, 4294901760
      %v2268 = vsub.f32 %v1449, %v2267
      %v2269 = vand.u32 %v2268, 4294901760
      %2270 = vmatmul.mubr.f32.gmra.mrb[0].mxu0 %v2269
      %v2271 = vpop.f32.mrb[0].mxu0
      %v2272 = vadd.f32 %v2077, %v2271
      %v2273 = vpop.f32.mrb[0].mxu0
      %2274 = vmatprep.mubr.f32.mxu0 0.0
      %v2275 = vand.u32 %v1450, 4294901760
      %v2276 = vsub.f32 %v1450, %v2275
      %v2277 = vand.u32 %v2276, 4294901760
      %2278 = vmatmul.mubr.f32.gmra.mrb[0].mxu0 %v2277
      %v2279 = vpop.f32.mrb[0].mxu0
      %v2280 = vadd.f32 %v2084, %v2279
      %v2281 = vpop.f32.mrb[0].mxu0
      %2282 = vmatprep.mubr.f32.mxu0 0.0
      %v2283 = vand.u32 %v1451, 4294901760
      %v2284 = vsub.f32 %v1451, %v2283
      %v2285 = vand.u32 %v2284, 4294901760
      %2286 = vmatmul.mubr.f32.gmra.mrb[0].mxu0 %v2285
      %v2287 = vpop.f32.mrb[0].mxu0
      %v2288 = vadd.f32 %v2091, %v2287
      %v2289 = vpop.f32.mrb[0].mxu0
      %2290 = vmatprep.mubr.f32.mxu0 0.0
      %v2291 = vand.u32 %v1452, 4294901760
      %v2292 = vsub.f32 %v1452, %v2291
      %v2293 = vand.u32 %v2292, 4294901760
      %2294 = vmatmul.mubr.f32.gmra.mrb[0].mxu0 %v2293
      %v2295 = vpop.f32.mrb[0].mxu0
      %v2296 = vadd.f32 %v2098, %v2295
      %v2297 = vpop.f32.mrb[0].mxu0
      %2298 = vmatprep.mubr.f32.mxu0 0.0
      %v2299 = vand.u32 %v1453, 4294901760
      %v2300 = vsub.f32 %v1453, %v2299
      %v2301 = vand.u32 %v2300, 4294901760
      %2302 = vmatmul.mubr.f32.gmra.mrb[0].mxu0 %v2301
      %v2303 = vpop.f32.mrb[0].mxu0
      %v2304 = vadd.f32 %v2105, %v2303
      %v2305 = vpop.f32.mrb[0].mxu0
      %2306 = vmatprep.mubr.f32.mxu0 0.0
      %v2307 = vand.u32 %v1454, 4294901760
      %v2308 = vsub.f32 %v1454, %v2307
      %v2309 = vand.u32 %v2308, 4294901760
      %2310 = vmatmul.mubr.f32.gmra.mrb[0].mxu0 %v2309
      %v2311 = vpop.f32.mrb[0].mxu0
      %v2312 = vadd.f32 %v2112, %v2311
      %v2313 = vpop.f32.mrb[0].mxu0
      %2314 = vmatprep.mubr.f32.mxu0 0.0
      %v2315 = vand.u32 %v1455, 4294901760
      %v2316 = vsub.f32 %v1455, %v2315
      %v2317 = vand.u32 %v2316, 4294901760
      %2318 = vmatmul.mubr.f32.gmra.mrb[0].mxu0 %v2317
      %v2319 = vpop.f32.mrb[0].mxu0
      %v2320 = vadd.f32 %v2119, %v2319
      %v2321 = vpop.f32.mrb[0].mxu0
      %2322 = vmatprep.mubr.f32.mxu0 0.0
      %v2323 = vand.u32 %v1456, 4294901760
      %v2324 = vsub.f32 %v1456, %v2323
      %v2325 = vand.u32 %v2324, 4294901760
      %2326 = vmatmul.mubr.f32.gmra.mrb[0].mxu0 %v2325
      %v2327 = vpop.f32.mrb[0].mxu0
      %v2328 = vadd.f32 %v2126, %v2327
      %v2329 = vpop.f32.mrb[0].mxu0
      %2330 = vmatprep.mubr.f32.mxu0 0.0
      %v2331 = vand.u32 %v1457, 4294901760
      %v2332 = vsub.f32 %v1457, %v2331
      %v2333 = vand.u32 %v2332, 4294901760
      %2334 = vmatmul.mubr.f32.gmra.mrb[0].mxu0 %v2333
      %v2335 = vpop.f32.mrb[0].mxu0
      %v2336 = vadd.f32 %v2133, %v2335
      %v2337 = vpop.f32.mrb[0].mxu0
      %2338 = vmatprep.mubr.f32.mxu0 0.0
      %v2339 = vand.u32 %v1458, 4294901760
      %v2340 = vsub.f32 %v1458, %v2339
      %v2341 = vand.u32 %v2340, 4294901760
      %2342 = vmatmul.mubr.f32.gmra.mrb[0].mxu0 %v2341
      %v2343 = vpop.f32.mrb[0].mxu0
      %v2344 = vadd.f32 %v2140, %v2343
      %v2345 = vpop.f32.mrb[0].mxu0
      %2346 = vmatprep.mubr.f32.mxu0 0.0
      %v2347 = vand.u32 %v1459, 4294901760
      %v2348 = vsub.f32 %v1459, %v2347
      %v2349 = vand.u32 %v2348, 4294901760
      %2350 = vmatmul.mubr.f32.gmra.mrb[0].mxu0 %v2349
      %v2351 = vpop.f32.mrb[0].mxu0
      %v2352 = vadd.f32 %v2147, %v2351
      %v2353 = vpop.f32.mrb[0].mxu0
      %2354 = vmatprep.mubr.f32.mxu0 0.0
      %v2355 = vand.u32 %v1460, 4294901760
      %v2356 = vsub.f32 %v1460, %v2355
      %v2357 = vand.u32 %v2356, 4294901760
      %2358 = vmatmul.mubr.f32.gmra.mrb[0].mxu0 %v2357
      %v2359 = vpop.f32.mrb[0].mxu0
      %v2360 = vadd.f32 %v2154, %v2359
      %v2361 = vpop.f32.mrb[0].mxu0
      %2362 = vmatprep.mubr.f32.mxu0 0.0
      %v2363 = vand.u32 %v1461, 4294901760
      %v2364 = vsub.f32 %v1461, %v2363
      %v2365 = vand.u32 %v2364, 4294901760
      %2366 = vmatmul.mubr.f32.gmra.mrb[0].mxu0 %v2365
      %v2367 = vpop.f32.mrb[0].mxu0
      %v2368 = vadd.f32 %v2161, %v2367
      %v2369 = vpop.f32.mrb[0].mxu0
      %2370 = vmatprep.mubr.f32.mxu0 0.0
      %v2371 = vand.u32 %v1462, 4294901760
      %v2372 = vsub.f32 %v1462, %v2371
      %v2373 = vand.u32 %v2372, 4294901760
      %2374 = vmatmul.mubr.f32.gmra.mrb[0].mxu0 %v2373
      %v2375 = vpop.f32.mrb[0].mxu0
      %v2376 = vadd.f32 %v2168, %v2375
      %v2377 = vpop.f32.mrb[0].mxu0
      %2378 = vmatprep.mubr.f32.mxu0 0.0
      %v2379 = vand.u32 %v1463, 4294901760
      %v2380 = vsub.f32 %v1463, %v2379
      %v2381 = vand.u32 %v2380, 4294901760
      %2382 = vmatmul.mubr.f32.gmra.mrb[0].mxu0 %v2381
      %v2383 = vpop.f32.mrb[0].mxu0
      %v2384 = vadd.f32 %v2175, %v2383
      %v2385 = vpop.f32.mrb[0].mxu0
      %2386 = vdwg.mxu0
      %2387 = vmatprep.subr.mxu0 0.0
      %v2388 = vand.u32 %v1464, 4294901760
      %v2389 = vsub.f32 %v1464, %v2388
      %v2390 = vand.u32 %v2389, 4294901760
      %2391 = vmatpush1.msra.mxu0 %v2390
      %2392 = vmatprep.subr.mxu0 0.0
      %v2393 = vand.u32 %v1465, 4294901760
      %v2394 = vsub.f32 %v1465, %v2393
      %v2395 = vand.u32 %v2394, 4294901760
      %2396 = vmatpush1.msra.mxu0 %v2395
      %2397 = vmatprep.subr.mxu0 0.0
      %v2398 = vand.u32 %v1466, 4294901760
      %v2399 = vsub.f32 %v1466, %v2398
      %v2400 = vand.u32 %v2399, 4294901760
      %2401 = vmatpush1.msra.mxu0 %v2400
      %2402 = vmatprep.subr.mxu0 0.0
      %v2403 = vand.u32 %v1467, 4294901760
      %v2404 = vsub.f32 %v1467, %v2403
      %v2405 = vand.u32 %v2404, 4294901760
      %2406 = vmatpush1.msra.mxu0 %v2405
      %2407 = vmatprep.subr.mxu0 0.0
      %v2408 = vand.u32 %v1468, 4294901760
      %v2409 = vsub.f32 %v1468, %v2408
      %v2410 = vand.u32 %v2409, 4294901760
      %2411 = vmatpush1.msra.mxu0 %v2410
      %2412 = vmatprep.subr.mxu0 0.0
      %v2413 = vand.u32 %v1469, 4294901760
      %v2414 = vsub.f32 %v1469, %v2413
      %v2415 = vand.u32 %v2414, 4294901760
      %2416 = vmatpush1.msra.mxu0 %v2415
      %2417 = vmatprep.subr.mxu0 0.0
      %v2418 = vand.u32 %v1470, 4294901760
      %v2419 = vsub.f32 %v1470, %v2418
      %v2420 = vand.u32 %v2419, 4294901760
      %2421 = vmatpush1.msra.mxu0 %v2420
      %2422 = vmatprep.subr.mxu0 0.0
      %v2423 = vand.u32 %v1471, 4294901760
      %v2424 = vsub.f32 %v1471, %v2423
      %v2425 = vand.u32 %v2424, 4294901760
      %2426 = vmatpush1.msra.mxu0 %v2425
      %2427 = vmatprep.subr.mxu0 0.0
      %v2428 = vand.u32 %v1472, 4294901760
      %v2429 = vsub.f32 %v1472, %v2428
      %v2430 = vand.u32 %v2429, 4294901760
      %2431 = vmatpush1.msra.mxu0 %v2430
      %2432 = vmatprep.subr.mxu0 0.0
      %v2433 = vand.u32 %v1473, 4294901760
      %v2434 = vsub.f32 %v1473, %v2433
      %v2435 = vand.u32 %v2434, 4294901760
      %2436 = vmatpush1.msra.mxu0 %v2435
      %2437 = vmatprep.subr.mxu0 0.0
      %v2438 = vand.u32 %v1474, 4294901760
      %v2439 = vsub.f32 %v1474, %v2438
      %v2440 = vand.u32 %v2439, 4294901760
      %2441 = vmatpush1.msra.mxu0 %v2440
      %2442 = vmatprep.subr.mxu0 0.0
      %v2443 = vand.u32 %v1475, 4294901760
      %v2444 = vsub.f32 %v1475, %v2443
      %v2445 = vand.u32 %v2444, 4294901760
      %2446 = vmatpush1.msra.mxu0 %v2445
      %2447 = vmatprep.subr.mxu0 0.0
      %v2448 = vand.u32 %v1476, 4294901760
      %v2449 = vsub.f32 %v1476, %v2448
      %v2450 = vand.u32 %v2449, 4294901760
      %2451 = vmatpush1.msra.mxu0 %v2450
      %2452 = vmatprep.subr.mxu0 0.0
      %v2453 = vand.u32 %v1477, 4294901760
      %v2454 = vsub.f32 %v1477, %v2453
      %v2455 = vand.u32 %v2454, 4294901760
      %2456 = vmatpush1.msra.mxu0 %v2455
      %2457 = vmatprep.subr.mxu0 0.0
      %v2458 = vand.u32 %v1478, 4294901760
      %v2459 = vsub.f32 %v1478, %v2458
      %v2460 = vand.u32 %v2459, 4294901760
      %2461 = vmatpush1.msra.mxu0 %v2460
      %2462 = vmatprep.subr.mxu0 0.0
      %v2463 = vand.u32 %v1479, 4294901760
      %v2464 = vsub.f32 %v1479, %v2463
      %v2465 = vand.u32 %v2464, 4294901760
      %2466 = vmatpush1.msra.mxu0 %v2465
      %2467 = vmatprep.subr.mxu0 0.0
      %2468 = vmatpush1.msra.mxu0 0.0
      %2469 = vmatprep.subr.mxu0 0.0
      %2470 = vmatpush1.msra.mxu0 0.0
      %2471 = vmatprep.subr.mxu0 0.0
      %2472 = vmatpush1.msra.mxu0 0.0
      %2473 = vmatprep.subr.mxu0 0.0
      %2474 = vmatpush1.msra.mxu0 0.0
      %2475 = vmatprep.subr.mxu0 0.0
      %2476 = vmatpush1.msra.mxu0 0.0
      %2477 = vmatprep.subr.mxu0 0.0
      %2478 = vmatpush1.msra.mxu0 0.0
      %2479 = vmatprep.subr.mxu0 0.0
      %2480 = vmatpush1.msra.mxu0 0.0
      %2481 = vmatprep.subr.mxu0 0.0
      %2482 = vmatpush1.msra.mxu0 0.0
      %2483 = vmatprep.subr.mxu0 0.0
      %2484 = vmatpush1.msra.mxu0 0.0
      %2485 = vmatprep.subr.mxu0 0.0
      %2486 = vmatpush1.msra.mxu0 0.0
      %2487 = vmatprep.subr.mxu0 0.0
      %2488 = vmatpush1.msra.mxu0 0.0
      %2489 = vmatprep.subr.mxu0 0.0
      %2490 = vmatpush1.msra.mxu0 0.0
      %2491 = vmatprep.subr.mxu0 0.0
      %2492 = vmatpush1.msra.mxu0 0.0
      %2493 = vmatprep.subr.mxu0 0.0
      %2494 = vmatpush1.msra.mxu0 0.0
      %2495 = vmatprep.subr.mxu0 0.0
      %2496 = vmatpush1.msra.mxu0 0.0
      %2497 = vmatprep.subr.mxu0 0.0
      %2498 = vmatpush1.msra.mxu0 0.0
      %2499 = vmatprep.mubr.f32.mxu0 0.0
      %v2500 = vand.u32 %v1448, 4294901760
      %2501 = vmatmul.mubr.f32.gmra.mrb[0].mxu0 %v2500
      %v2502 = vpop.f32.mrb[0].mxu0
      %v2503 = vadd.f32 %v2264, %v2502
      %v2504 = vpop.f32.mrb[0].mxu0
      %2505 = vmatprep.mubr.f32.mxu0 0.0
      %v2506 = vand.u32 %v1449, 4294901760
      %2507 = vmatmul.mubr.f32.gmra.mrb[0].mxu0 %v2506
      %v2508 = vpop.f32.mrb[0].mxu0
      %v2509 = vadd.f32 %v2272, %v2508
      %v2510 = vpop.f32.mrb[0].mxu0
      %2511 = vmatprep.mubr.f32.mxu0 0.0
      %v2512 = vand.u32 %v1450, 4294901760
      %2513 = vmatmul.mubr.f32.gmra.mrb[0].mxu0 %v2512
      %v2514 = vpop.f32.mrb[0].mxu0
      %v2515 = vadd.f32 %v2280, %v2514
      %v2516 = vpop.f32.mrb[0].mxu0
      %2517 = vmatprep.mubr.f32.mxu0 0.0
      %v2518 = vand.u32 %v1451, 4294901760
      %2519 = vmatmul.mubr.f32.gmra.mrb[0].mxu0 %v2518
      %v2520 = vpop.f32.mrb[0].mxu0
      %v2521 = vadd.f32 %v2288, %v2520
      %v2522 = vpop.f32.mrb[0].mxu0
      %2523 = vmatprep.mubr.f32.mxu0 0.0
      %v2524 = vand.u32 %v1452, 4294901760
      %2525 = vmatmul.mubr.f32.gmra.mrb[0].mxu0 %v2524
      %v2526 = vpop.f32.mrb[0].mxu0
      %v2527 = vadd.f32 %v2296, %v2526
      %v2528 = vpop.f32.mrb[0].mxu0
      %2529 = vmatprep.mubr.f32.mxu0 0.0
      %v2530 = vand.u32 %v1453, 4294901760
      %2531 = vmatmul.mubr.f32.gmra.mrb[0].mxu0 %v2530
      %v2532 = vpop.f32.mrb[0].mxu0
      %v2533 = vadd.f32 %v2304, %v2532
      %v2534 = vpop.f32.mrb[0].mxu0
      %2535 = vmatprep.mubr.f32.mxu0 0.0
      %v2536 = vand.u32 %v1454, 4294901760
      %2537 = vmatmul.mubr.f32.gmra.mrb[0].mxu0 %v2536
      %v2538 = vpop.f32.mrb[0].mxu0
      %v2539 = vadd.f32 %v2312, %v2538
      %v2540 = vpop.f32.mrb[0].mxu0
      %2541 = vmatprep.mubr.f32.mxu0 0.0
      %v2542 = vand.u32 %v1455, 4294901760
      %2543 = vmatmul.mubr.f32.gmra.mrb[0].mxu0 %v2542
      %v2544 = vpop.f32.mrb[0].mxu0
      %v2545 = vadd.f32 %v2320, %v2544
      %v2546 = vpop.f32.mrb[0].mxu0
      %2547 = vmatprep.mubr.f32.mxu0 0.0
      %v2548 = vand.u32 %v1456, 4294901760
      %2549 = vmatmul.mubr.f32.gmra.mrb[0].mxu0 %v2548
      %v2550 = vpop.f32.mrb[0].mxu0
      %v2551 = vadd.f32 %v2328, %v2550
      %v2552 = vpop.f32.mrb[0].mxu0
      %2553 = vmatprep.mubr.f32.mxu0 0.0
      %v2554 = vand.u32 %v1457, 4294901760
      %2555 = vmatmul.mubr.f32.gmra.mrb[0].mxu0 %v2554
      %v2556 = vpop.f32.mrb[0].mxu0
      %v2557 = vadd.f32 %v2336, %v2556
      %v2558 = vpop.f32.mrb[0].mxu0
      %2559 = vmatprep.mubr.f32.mxu0 0.0
      %v2560 = vand.u32 %v1458, 4294901760
      %2561 = vmatmul.mubr.f32.gmra.mrb[0].mxu0 %v2560
      %v2562 = vpop.f32.mrb[0].mxu0
      %v2563 = vadd.f32 %v2344, %v2562
      %v2564 = vpop.f32.mrb[0].mxu0
      %2565 = vmatprep.mubr.f32.mxu0 0.0
      %v2566 = vand.u32 %v1459, 4294901760
      %2567 = vmatmul.mubr.f32.gmra.mrb[0].mxu0 %v2566
      %v2568 = vpop.f32.mrb[0].mxu0
      %v2569 = vadd.f32 %v2352, %v2568
      %v2570 = vpop.f32.mrb[0].mxu0
      %2571 = vmatprep.mubr.f32.mxu0 0.0
      %v2572 = vand.u32 %v1460, 4294901760
      %2573 = vmatmul.mubr.f32.gmra.mrb[0].mxu0 %v2572
      %v2574 = vpop.f32.mrb[0].mxu0
      %v2575 = vadd.f32 %v2360, %v2574
      %v2576 = vpop.f32.mrb[0].mxu0
      %2577 = vmatprep.mubr.f32.mxu0 0.0
      %v2578 = vand.u32 %v1461, 4294901760
      %2579 = vmatmul.mubr.f32.gmra.mrb[0].mxu0 %v2578
      %v2580 = vpop.f32.mrb[0].mxu0
      %v2581 = vadd.f32 %v2368, %v2580
      %v2582 = vpop.f32.mrb[0].mxu0
      %2583 = vmatprep.mubr.f32.mxu0 0.0
      %v2584 = vand.u32 %v1462, 4294901760
      %2585 = vmatmul.mubr.f32.gmra.mrb[0].mxu0 %v2584
      %v2586 = vpop.f32.mrb[0].mxu0
      %v2587 = vadd.f32 %v2376, %v2586
      %v2588 = vpop.f32.mrb[0].mxu0
      %2589 = vmatprep.mubr.f32.mxu0 0.0
      %v2590 = vand.u32 %v1463, 4294901760
      %2591 = vmatmul.mubr.f32.gmra.mrb[0].mxu0 %v2590
      %v2592 = vpop.f32.mrb[0].mxu0
      %v2593 = vadd.f32 %v2384, %v2592
      %v2594 = vpop.f32.mrb[0].mxu0
      %2595 = vdwg.mxu0
      %2596 = vmatprep.subr.mxu0 0.0
      %v2597 = vand.u32 %v1464, 4294901760
      %2598 = vmatpush1.msra.mxu0 %v2597
      %2599 = vmatprep.subr.mxu0 0.0
      %v2600 = vand.u32 %v1465, 4294901760
      %2601 = vmatpush1.msra.mxu0 %v2600
      %2602 = vmatprep.subr.mxu0 0.0
      %v2603 = vand.u32 %v1466, 4294901760
      %2604 = vmatpush1.msra.mxu0 %v2603
      %2605 = vmatprep.subr.mxu0 0.0
      %v2606 = vand.u32 %v1467, 4294901760
      %2607 = vmatpush1.msra.mxu0 %v2606
      %2608 = vmatprep.subr.mxu0 0.0
      %v2609 = vand.u32 %v1468, 4294901760
      %2610 = vmatpush1.msra.mxu0 %v2609
      %2611 = vmatprep.subr.mxu0 0.0
      %v2612 = vand.u32 %v1469, 4294901760
      %2613 = vmatpush1.msra.mxu0 %v2612
      %2614 = vmatprep.subr.mxu0 0.0
      %v2615 = vand.u32 %v1470, 4294901760
      %2616 = vmatpush1.msra.mxu0 %v2615
      %2617 = vmatprep.subr.mxu0 0.0
      %v2618 = vand.u32 %v1471, 4294901760
      %2619 = vmatpush1.msra.mxu0 %v2618
      %2620 = vmatprep.subr.mxu0 0.0
      %v2621 = vand.u32 %v1472, 4294901760
      %2622 = vmatpush1.msra.mxu0 %v2621
      %2623 = vmatprep.subr.mxu0 0.0
      %v2624 = vand.u32 %v1473, 4294901760
      %2625 = vmatpush1.msra.mxu0 %v2624
      %2626 = vmatprep.subr.mxu0 0.0
      %v2627 = vand.u32 %v1474, 4294901760
      %2628 = vmatpush1.msra.mxu0 %v2627
      %2629 = vmatprep.subr.mxu0 0.0
      %v2630 = vand.u32 %v1475, 4294901760
      %2631 = vmatpush1.msra.mxu0 %v2630
      %2632 = vmatprep.subr.mxu0 0.0
      %v2633 = vand.u32 %v1476, 4294901760
      %2634 = vmatpush1.msra.mxu0 %v2633
      %2635 = vmatprep.subr.mxu0 0.0
      %v2636 = vand.u32 %v1477, 4294901760
      %2637 = vmatpush1.msra.mxu0 %v2636
      %2638 = vmatprep.subr.mxu0 0.0
      %v2639 = vand.u32 %v1478, 4294901760
      %2640 = vmatpush1.msra.mxu0 %v2639
      %2641 = vmatprep.subr.mxu0 0.0
      %v2642 = vand.u32 %v1479, 4294901760
      %2643 = vmatpush1.msra.mxu0 %v2642
      %2644 = vmatprep.subr.mxu0 0.0
      %2645 = vmatpush1.msra.mxu0 0.0
      %2646 = vmatprep.subr.mxu0 0.0
      %2647 = vmatpush1.msra.mxu0 0.0
      %2648 = vmatprep.subr.mxu0 0.0
      %2649 = vmatpush1.msra.mxu0 0.0
      %2650 = vmatprep.subr.mxu0 0.0
      %2651 = vmatpush1.msra.mxu0 0.0
      %2652 = vmatprep.subr.mxu0 0.0
      %2653 = vmatpush1.msra.mxu0 0.0
      %2654 = vmatprep.subr.mxu0 0.0
      %2655 = vmatpush1.msra.mxu0 0.0
      %2656 = vmatprep.subr.mxu0 0.0
      %2657 = vmatpush1.msra.mxu0 0.0
      %2658 = vmatprep.subr.mxu0 0.0
      %2659 = vmatpush1.msra.mxu0 0.0
      %2660 = vmatprep.subr.mxu0 0.0
      %2661 = vmatpush1.msra.mxu0 0.0
      %2662 = vmatprep.subr.mxu0 0.0
      %2663 = vmatpush1.msra.mxu0 0.0
      %2664 = vmatprep.subr.mxu0 0.0
      %2665 = vmatpush1.msra.mxu0 0.0
      %2666 = vmatprep.subr.mxu0 0.0
      %2667 = vmatpush1.msra.mxu0 0.0
      %2668 = vmatprep.subr.mxu0 0.0
      %2669 = vmatpush1.msra.mxu0 0.0
      %2670 = vmatprep.subr.mxu0 0.0
      %2671 = vmatpush1.msra.mxu0 0.0
      %2672 = vmatprep.subr.mxu0 0.0
      %2673 = vmatpush1.msra.mxu0 0.0
      %2674 = vmatprep.subr.mxu0 0.0
      %2675 = vmatpush1.msra.mxu0 0.0
      %2676 = vmatprep.mubr.f32.mxu0 0.0
      %v2677 = vand.u32 %v1448, 4294901760
      %2678 = vmatmul.mubr.f32.gmra.mrb[0].mxu0 %v2677
      %v2679 = vpop.f32.mrb[0].mxu0
      %v2680 = vadd.f32 %v2503, %v2679
      %v2681 = vpop.f32.mrb[0].mxu0
      %2682 = vmatprep.mubr.f32.mxu0 0.0
      %v2683 = vand.u32 %v1449, 4294901760
      %2684 = vmatmul.mubr.f32.gmra.mrb[0].mxu0 %v2683
      %v2685 = vpop.f32.mrb[0].mxu0
      %v2686 = vadd.f32 %v2509, %v2685
      %v2687 = vpop.f32.mrb[0].mxu0
      %2688 = vmatprep.mubr.f32.mxu0 0.0
      %v2689 = vand.u32 %v1450, 4294901760
      %2690 = vmatmul.mubr.f32.gmra.mrb[0].mxu0 %v2689
      %v2691 = vpop.f32.mrb[0].mxu0
      %v2692 = vadd.f32 %v2515, %v2691
      %v2693 = vpop.f32.mrb[0].mxu0
      %2694 = vmatprep.mubr.f32.mxu0 0.0
      %v2695 = vand.u32 %v1451, 4294901760
      %2696 = vmatmul.mubr.f32.gmra.mrb[0].mxu0 %v2695
      %v2697 = vpop.f32.mrb[0].mxu0
      %v2698 = vadd.f32 %v2521, %v2697
      %v2699 = vpop.f32.mrb[0].mxu0
      %2700 = vmatprep.mubr.f32.mxu0 0.0
      %v2701 = vand.u32 %v1452, 4294901760
      %2702 = vmatmul.mubr.f32.gmra.mrb[0].mxu0 %v2701
      %v2703 = vpop.f32.mrb[0].mxu0
      %v2704 = vadd.f32 %v2527, %v2703
      %v2705 = vpop.f32.mrb[0].mxu0
      %2706 = vmatprep.mubr.f32.mxu0 0.0
      %v2707 = vand.u32 %v1453, 4294901760
      %2708 = vmatmul.mubr.f32.gmra.mrb[0].mxu0 %v2707
      %v2709 = vpop.f32.mrb[0].mxu0
      %v2710 = vadd.f32 %v2533, %v2709
      %v2711 = vpop.f32.mrb[0].mxu0
      %2712 = vmatprep.mubr.f32.mxu0 0.0
      %v2713 = vand.u32 %v1454, 4294901760
      %2714 = vmatmul.mubr.f32.gmra.mrb[0].mxu0 %v2713
      %v2715 = vpop.f32.mrb[0].mxu0
      %v2716 = vadd.f32 %v2539, %v2715
      %v2717 = vpop.f32.mrb[0].mxu0
      %2718 = vmatprep.mubr.f32.mxu0 0.0
      %v2719 = vand.u32 %v1455, 4294901760
      %2720 = vmatmul.mubr.f32.gmra.mrb[0].mxu0 %v2719
      %v2721 = vpop.f32.mrb[0].mxu0
      %v2722 = vadd.f32 %v2545, %v2721
      %v2723 = vpop.f32.mrb[0].mxu0
      %2724 = vmatprep.mubr.f32.mxu0 0.0
      %v2725 = vand.u32 %v1456, 4294901760
      %2726 = vmatmul.mubr.f32.gmra.mrb[0].mxu0 %v2725
      %v2727 = vpop.f32.mrb[0].mxu0
      %v2728 = vadd.f32 %v2551, %v2727
      %v2729 = vpop.f32.mrb[0].mxu0
      %2730 = vmatprep.mubr.f32.mxu0 0.0
      %v2731 = vand.u32 %v1457, 4294901760
      %2732 = vmatmul.mubr.f32.gmra.mrb[0].mxu0 %v2731
      %v2733 = vpop.f32.mrb[0].mxu0
      %v2734 = vadd.f32 %v2557, %v2733
      %v2735 = vpop.f32.mrb[0].mxu0
      %2736 = vmatprep.mubr.f32.mxu0 0.0
      %v2737 = vand.u32 %v1458, 4294901760
      %2738 = vmatmul.mubr.f32.gmra.mrb[0].mxu0 %v2737
      %v2739 = vpop.f32.mrb[0].mxu0
      %v2740 = vadd.f32 %v2563, %v2739
      %v2741 = vpop.f32.mrb[0].mxu0
      %2742 = vmatprep.mubr.f32.mxu0 0.0
      %v2743 = vand.u32 %v1459, 4294901760
      %2744 = vmatmul.mubr.f32.gmra.mrb[0].mxu0 %v2743
      %v2745 = vpop.f32.mrb[0].mxu0
      %v2746 = vadd.f32 %v2569, %v2745
      %v2747 = vpop.f32.mrb[0].mxu0
      %2748 = vmatprep.mubr.f32.mxu0 0.0
      %v2749 = vand.u32 %v1460, 4294901760
      %2750 = vmatmul.mubr.f32.gmra.mrb[0].mxu0 %v2749
      %v2751 = vpop.f32.mrb[0].mxu0
      %v2752 = vadd.f32 %v2575, %v2751
      %v2753 = vpop.f32.mrb[0].mxu0
      %2754 = vmatprep.mubr.f32.mxu0 0.0
      %v2755 = vand.u32 %v1461, 4294901760
      %2756 = vmatmul.mubr.f32.gmra.mrb[0].mxu0 %v2755
      %v2757 = vpop.f32.mrb[0].mxu0
      %v2758 = vadd.f32 %v2581, %v2757
      %v2759 = vpop.f32.mrb[0].mxu0
      %2760 = vmatprep.mubr.f32.mxu0 0.0
      %v2761 = vand.u32 %v1462, 4294901760
      %2762 = vmatmul.mubr.f32.gmra.mrb[0].mxu0 %v2761
      %v2763 = vpop.f32.mrb[0].mxu0
      %v2764 = vadd.f32 %v2587, %v2763
      %v2765 = vpop.f32.mrb[0].mxu0
      %2766 = vmatprep.mubr.f32.mxu0 0.0
      %v2767 = vand.u32 %v1463, 4294901760
      %2768 = vmatmul.mubr.f32.gmra.mrb[0].mxu0 %v2767
      %v2769 = vpop.f32.mrb[0].mxu0
      %v2770 = vadd.f32 %v2593, %v2769
      %v2771 = vpop.f32.mrb[0].mxu0
      %2772 = vdwg.mxu0
      %vm2773 = vcmp.gt.f32.partialorder %v2680, 0.0
      %vm2774 = vcmp.gt.f32.partialorder %v2686, 0.0
      %vm2775 = vcmp.gt.f32.partialorder %v2692, 0.0
      %vm2776 = vcmp.gt.f32.partialorder %v2698, 0.0
      %vm2777 = vcmp.gt.f32.partialorder %v2704, 0.0
      %vm2778 = vcmp.gt.f32.partialorder %v2710, 0.0
      %vm2779 = vcmp.gt.f32.partialorder %v2716, 0.0
      %vm2780 = vcmp.gt.f32.partialorder %v2722, 0.0
      %vm2781 = vcmp.gt.f32.partialorder %v2728, 0.0
      %vm2782 = vcmp.gt.f32.partialorder %v2734, 0.0
      %vm2783 = vcmp.gt.f32.partialorder %v2740, 0.0
      %vm2784 = vcmp.gt.f32.partialorder %v2746, 0.0
      %vm2785 = vcmp.gt.f32.partialorder %v2752, 0.0
      %vm2786 = vcmp.gt.f32.partialorder %v2758, 0.0
      %vm2787 = vcmp.gt.f32.partialorder %v2764, 0.0
      %vm2788 = vcmp.gt.f32.partialorder %v2770, 0.0
      %v2789 = vmul.f32 %v2680, 0.01
      %v2790 = vmul.f32 %v2686, 0.01
      %v2791 = vmul.f32 %v2692, 0.01
      %v2792 = vmul.f32 %v2698, 0.01
      %v2793 = vmul.f32 %v2704, 0.01
      %v2794 = vmul.f32 %v2710, 0.01
      %v2795 = vmul.f32 %v2716, 0.01
      %v2796 = vmul.f32 %v2722, 0.01
      %v2797 = vmul.f32 %v2728, 0.01
      %v2798 = vmul.f32 %v2734, 0.01
      %v2799 = vmul.f32 %v2740, 0.01
      %v2800 = vmul.f32 %v2746, 0.01
      %v2801 = vmul.f32 %v2752, 0.01
      %v2802 = vmul.f32 %v2758, 0.01
      %v2803 = vmul.f32 %v2764, 0.01
      %v2804 = vmul.f32 %v2770, 0.01
      %v2805 = vsel %vm2773, %v2680, %v2789
      %v2806 = vsel %vm2774, %v2686, %v2790
      %v2807 = vsel %vm2775, %v2692, %v2791
      %v2808 = vsel %vm2776, %v2698, %v2792
      %v2809 = vsel %vm2777, %v2704, %v2793
      %v2810 = vsel %vm2778, %v2710, %v2794
      %v2811 = vsel %vm2779, %v2716, %v2795
      %v2812 = vsel %vm2780, %v2722, %v2796
      %v2813 = vsel %vm2781, %v2728, %v2797
      %v2814 = vsel %vm2782, %v2734, %v2798
      %v2815 = vsel %vm2783, %v2740, %v2799
      %v2816 = vsel %vm2784, %v2746, %v2800
      %v2817 = vsel %vm2785, %v2752, %v2801
      %v2818 = vsel %vm2786, %v2758, %v2802
      %v2819 = vsel %vm2787, %v2764, %v2803
      %v2820 = vsel %vm2788, %v2770, %v2804
      %2821 = vst [vmem:[#allocation9] sm:$0xff] %v2805
      %2822 = vst [vmem:[#allocation9 + $0x8] sm:$0xff] %v2806
      %2823 = vst [vmem:[#allocation9 + $0x10] sm:$0xff] %v2807
      %2824 = vst [vmem:[#allocation9 + $0x18] sm:$0xff] %v2808
      %2825 = vst [vmem:[#allocation9 + $0x20] sm:$0xff] %v2809
      %2826 = vst [vmem:[#allocation9 + $0x28] sm:$0xff] %v2810
      %2827 = vst [vmem:[#allocation9 + $0x30] sm:$0xff] %v2811
      %2828 = vst [vmem:[#allocation9 + $0x38] sm:$0xff] %v2812
      %2829 = vst [vmem:[#allocation9 + $0x40] sm:$0xff] %v2813
      %2830 = vst [vmem:[#allocation9 + $0x48] sm:$0xff] %v2814
      %2831 = vst [vmem:[#allocation9 + $0x50] sm:$0xff] %v2815
      %2832 = vst [vmem:[#allocation9 + $0x58] sm:$0xff] %v2816
      %2833 = vst [vmem:[#allocation9 + $0x60] sm:$0xff] %v2817
      %2834 = vst [vmem:[#allocation9 + $0x68] sm:$0xff] %v2818
      %2835 = vst [vmem:[#allocation9 + $0x70] sm:$0xff] %v2819
      %2836 = vst [vmem:[#allocation9 + $0x78] sm:$0xff] %v2820
    $region37: #{tpu_custom_call.1} parent=1 // pred_fallthru
      _
    // Predicated region
    $region38: #{tpu_custom_call.1} parent=1 // pred_check
      _
    $region39: #{tpu_custom_call.1} parent=1 // pred_check_branch
      %2838 = sbr.rel (0) target = $region41
    $region40: #{tpu_custom_call.1} parent=1 // pred_region
      %s2840 = ssub.s32 2048, 2048
      %2841 = vsyncadd [#allocation5], %s2840
      %s2842 = sshll.u32 [#allocation9], 4
      %s2843 = int_to_ptr.vmem [resolvable:$true] %s2842
      %2848 = dma.vmem_to_hbm [thread:$0]  %s2843, 2048, %s4, [#allocation5], 128, 128, 8
    $region41: #{tpu_custom_call.1} parent=1 // pred_fallthru
      _
    // Predicated region
    $region42: #{tpu_custom_call.1} parent=1 // pred_check
      _
    $region43: #{tpu_custom_call.1} parent=1 // pred_check_branch
      %2850 = sbr.rel (0) target = $region45
    $region44: #{tpu_custom_call.1} parent=1 // pred_region
      %2851 = dma.done [#allocation5], 2048
    $region45: #{tpu_custom_call.1} parent=1 // pred_fallthru
      _
    %2852 = vsyncpa [#allocation4], 1
    %2853 = vsyncpa [#allocation7], 1
    %2854 = vsyncpa [#allocation5], 1

</llo_original>
